<compile_context>
chip_gen: v7x
topology: tpu7x:2x2x1
jax: 0.10.0
libtpu: 0.0.40
codegen_flags: <defaults>
</compile_context>

<pallas_src>
import functools

import jax
import jax.numpy as jnp
from jax.experimental import pallas as pl
from jax.experimental.pallas import tpu as pltpu


LANE = 128
TILE_CAP_DEFAULT = 1024   # rows per grid step; ~1 KB/row working set -> tiny vs VMEM


def _round_up(x, m):
    return (x + m - 1) // m * m


def _cdiv(a, b):
    return (a + b - 1) // b


def _dot(a, b):
    # f32 accumulate + HIGHEST precision so results match a true f32 reference.
    return jnp.dot(a, b, preferred_element_type=jnp.float32,
                   precision=jax.lax.Precision.HIGHEST)


# ---------------------------------------------------------------------------
# Kernel: fused forward-model + inverse-model 2-layer MLPs for one batch tile.
# ---------------------------------------------------------------------------
def _icm_fused_kernel(ce_ref, ne_ref, act_ref,
                      w1ce_ref, w1ne_ref, w1a_ref, b1_ref,
                      w2_ref, b2_ref,
                      fwd_ref, inv_ref):
    ce = ce_ref[...]                       # (tm, F)  curr_emb tile
    ne = ne_ref[...]                       # (tm, F)  next_emb tile
    act = act_ref[...]                     # (tm, 1)  int32 actions
    tm = ce.shape[0]
    a_pad = w1a_ref.shape[0]
    F = fwd_ref.shape[1]
    A = inv_ref.shape[1]

    # one_hot(curr_act) built in-kernel (rows >= action_num hit zero weights).
    one_hot = (jax.lax.broadcasted_iota(jnp.int32, (tm, a_pad), 1)
               == act).astype(ce.dtype)

    # Layer 1 of BOTH heads fused into one (tm, 2L) hidden block:
    #   columns [0, L)   -> forward-model hidden (ce + one_hot parts)
    #   columns [L, 2L)  -> inverse-model hidden (ce + ne parts)
    h = (_dot(ce, w1ce_ref[...])
         + _dot(ne, w1ne_ref[...])
         + _dot(one_hot, w1a_ref[...])
         + b1_ref[...])
    h = jnp.maximum(h, 0.0)

    # Layer 2 of both heads as one lane-dense matmul; packed columns:
    #   [0, F)     -> forward-model prediction
    #   [F, F + A) -> inverse-model logits
    y = _dot(h, w2_ref[...]) + b2_ref[...]
    fwd_ref[...] = y[:, :F].astype(fwd_ref.dtype)
    inv_ref[...] = y[:, F:F + A].astype(inv_ref.dtype)


# ---------------------------------------------------------------------------
# Parameter creation (torch-like init) and one-time kernel packing.
# ---------------------------------------------------------------------------
def _init_linear(key, fan_in, fan_out, dtype=jnp.float32):
    kw, kb = jax.random.split(key)
    bound = 1.0 / jnp.sqrt(jnp.asarray(fan_in, dtype))
    w = jax.random.uniform(kw, (fan_in, fan_out), dtype, -bound, bound)
    b = jax.random.uniform(kb, (fan_out,), dtype, -bound, bound)
    return w, b


def make_icm_params(key, features_dim, latents_dim, action_num):
    kf1, kf2, ki1, ki2 = jax.random.split(key, 4)
    fwd_w1, fwd_b1 = _init_linear(kf1, features_dim + action_num, latents_dim)
    fwd_w2, fwd_b2 = _init_linear(kf2, latents_dim, features_dim)
    inv_w1, inv_b1 = _init_linear(ki1, 2 * features_dim, latents_dim)
    inv_w2, inv_b2 = _init_linear(ki2, latents_dim, action_num)
    return {
        "fwd": (fwd_w1, fwd_b1, fwd_w2, fwd_b2),
        "inv": (inv_w1, inv_b1, inv_w2, inv_b2),
    }


def pack_icm_params(params, features_dim, action_num):
    """One-time repack of natural params into fused, lane-dense kernel arrays."""
    fwd_w1, fwd_b1, fwd_w2, fwd_b2 = params["fwd"]
    inv_w1, inv_b1, inv_w2, inv_b2 = params["inv"]
    F, A = features_dim, action_num
    L = fwd_w1.shape[1]
    dtype = fwd_w1.dtype

    assert fwd_w1.shape == (F + A, L), fwd_w1.shape
    assert inv_w1.shape == (2 * F, L), inv_w1.shape
    assert fwd_w2.shape == (L, F) and inv_w2.shape == (L, A)

    a_pad = max(_round_up(A, 8), 8)               # sublane-aligned action block
    out_pad = _round_up(F + A, LANE)              # lane-dense layer-2 width
    assert F + A <= out_pad

    # Layer 1 packed as a (*, 2L) block: cols [0,L)=fwd hidden, [L,2L)=inv hidden.
    w1ce = jnp.concatenate([fwd_w1[:F], inv_w1[:F]], axis=1)            # (F, 2L)
    w1ne = jnp.concatenate([jnp.zeros((F, L), dtype), inv_w1[F:]], axis=1)  # (F, 2L)
    w1a = jnp.zeros((a_pad, 2 * L), dtype).at[:A, :L].set(fwd_w1[F:])   # (a_pad, 2L)
    b1 = jnp.concatenate([fwd_b1, inv_b1]).reshape(1, 2 * L)            # (1, 2L)

    # Layer 2: stacked vertically into one (2L, out_pad) matrix.
    w2 = jnp.zeros((2 * L, out_pad), dtype)
    w2 = w2.at[:L, :F].set(fwd_w2)
    w2 = w2.at[L:, F:F + A].set(inv_w2)                                 # (2L, 128)
    b2 = (jnp.zeros((1, out_pad), dtype)
          .at[0, :F].set(fwd_b2)
          .at[0, F:F + A].set(inv_b2))                                  # (1, 128)

    return {"w1ce": w1ce, "w1ne": w1ne, "w1a": w1a, "b1": b1,
            "w2": w2, "b2": b2}


# ---------------------------------------------------------------------------
# Wrapper: one fused pallas_call, full-array block for small B, row tiling for
# large B (ragged last tile handled by Pallas OOB masking -> no jnp.pad copy).
# ---------------------------------------------------------------------------
@functools.partial(jax.jit, static_argnames=("action_num", "tile_cap"))
def icm_output_heads(packed, curr_emb, next_emb, curr_act, *,
                     action_num, tile_cap=TILE_CAP_DEFAULT):
    """Replicates ICMOutputHeads.forward -> (fwd_pred_emb, inv_pred_logits)."""
    B, F = curr_emb.shape
    A = action_num

    if B <= tile_cap:
        # Single full-array block: no padding, no ragged tile, grid=(1,).
        tm, grid = B, 1
    else:
        nt = _cdiv(B, tile_cap)
        if nt % 2:
            nt += 1                       # even tile count -> balanced v7x 2-TC split
        tm = _round_up(_cdiv(B, nt), 8)   # sublane-aligned row tile
        grid = _cdiv(B, tm)               # last tile ragged -> OOB writes discarded

    act2d = curr_act.astype(jnp.int32).reshape(B, 1)

    def row_spec(last):
        return pl.BlockSpec((tm, last), lambda i: (i, 0))

    def const_spec(arr):                  # weights stay VMEM-resident across tiles
        return pl.BlockSpec(arr.shape, lambda i: (0, 0))

    fwd_out, inv_out = pl.pallas_call(
        _icm_fused_kernel,
        out_shape=(jax.ShapeDtypeStruct((B, F), curr_emb.dtype),
                   jax.ShapeDtypeStruct((B, A), curr_emb.dtype)),
        grid=(grid,),
        in_specs=[
            row_spec(F),                   # curr_emb
            row_spec(F),                   # next_emb
            row_spec(1),                   # curr_act (int32 column)
            const_spec(packed["w1ce"]),
            const_spec(packed["w1ne"]),
            const_spec(packed["w1a"]),
            const_spec(packed["b1"]),
            const_spec(packed["w2"]),
            const_spec(packed["b2"]),
        ],
        out_specs=(pl.BlockSpec((tm, F), lambda i: (i, 0)),
                   pl.BlockSpec((tm, A), lambda i: (i, 0))),
        compiler_params=pltpu.CompilerParams(
            dimension_semantics=("parallel",)),
        # TODO(synk): if tile_cap is ever pushed past ~4096 on v5e, set
        # vmem_limit_bytes explicitly (16 MiB default scoped VMEM there).
    )(
        curr_emb, next_emb, act2d,
        packed["w1ce"], packed["w1ne"], packed["w1a"], packed["b1"],
        packed["w2"], packed["b2"],
    )
    return fwd_out, inv_out


# ---------------------------------------------------------------------------
# Pure-JAX reference (mirrors the PyTorch module exactly, true-f32 math).
# ---------------------------------------------------------------------------
def _reference(params, curr_emb, next_emb, curr_act, action_num):
    one_hot = jax.nn.one_hot(curr_act, action_num, dtype=curr_emb.dtype)
    fwd_in = jnp.concatenate([curr_emb, one_hot], axis=1)
    inv_in = jnp.concatenate([curr_emb, next_emb], axis=1)

    def mlp(x, w1, b1, w2, b2):
        h = jnp.maximum(
            jnp.dot(x, w1, precision=jax.lax.Precision.HIGHEST) + b1, 0.0)
        return jnp.dot(h, w2, precision=jax.lax.Precision.HIGHEST) + b2

    return mlp(fwd_in, *params["fwd"]), mlp(inv_in, *params["inv"])


if __name__ == "__main__":
    FEATURES = 32    # features_dim
    LATENTS = 64     # latents_dim
    ACTIONS = 4      # action_num

    key = jax.random.PRNGKey(0)
    kp, kdata = jax.random.split(key)
    params = make_icm_params(kp, FEATURES, LATENTS, ACTIONS)
    packed = pack_icm_params(params, FEATURES, ACTIONS)   # one-time repack

    def run_case(data_key, B, tile_cap=TILE_CAP_DEFAULT):
        ke1, ke2, ka = jax.random.split(data_key, 3)
        curr_emb = jax.random.normal(ke1, (B, FEATURES), jnp.float32)
        next_emb = jax.random.normal(ke2, (B, FEATURES), jnp.float32)
        curr_act = jax.random.randint(ka, (B,), 0, ACTIONS, dtype=jnp.int32)

        fwd_pred, inv_logits = icm_output_heads(
            packed, curr_emb, next_emb, curr_act,
            action_num=ACTIONS, tile_cap=tile_cap)
        jax.block_until_ready((fwd_pred, inv_logits))

        ref_fwd, ref_inv = _reference(params, curr_emb, next_emb, curr_act, ACTIONS)
        assert fwd_pred.shape == (B, FEATURES)
        assert inv_logits.shape == (B, ACTIONS)
        assert jnp.allclose(fwd_pred, ref_fwd, atol=1e-4, rtol=1e-4)
        assert jnp.allclose(inv_logits, ref_inv, atol=1e-4, rtol=1e-4)

    k1, k2, k3 = jax.random.split(kdata, 3)
    run_case(k1, B=8)                    # tiny batch, single full-array block
    run_case(k2, B=300)                  # non-multiple-of-8 batch, still grid=(1,)
    run_case(k3, B=50, tile_cap=16)      # exercises multi-tile grid + ragged last tile

    print("KERNEL_OK")
</pallas_src>

<mosaic_0001>
module attributes {stable_mosaic.version = 11 : i64} {
  func.func @_icm_fused_kernel(%arg0: i32, %arg1: memref<8x32xf32, #tpu.memory_space<vmem>>, %arg2: memref<8x32xf32, #tpu.memory_space<vmem>>, %arg3: memref<8x1xi32, #tpu.memory_space<vmem>>, %arg4: memref<32x128xf32, #tpu.memory_space<vmem>>, %arg5: memref<32x128xf32, #tpu.memory_space<vmem>>, %arg6: memref<8x128xf32, #tpu.memory_space<vmem>>, %arg7: memref<1x128xf32, #tpu.memory_space<vmem>>, %arg8: memref<128x128xf32, #tpu.memory_space<vmem>>, %arg9: memref<1x128xf32, #tpu.memory_space<vmem>>, %arg10: memref<8x32xf32, #tpu.memory_space<vmem>>, %arg11: memref<8x4xf32, #tpu.memory_space<vmem>>) attributes {dimension_semantics = [#tpu.dimension_semantics<parallel>], iteration_bounds = array<i64: 1>, scalar_prefetch = 0 : i64, scratch_operands = 0 : i64, tpu.core_type = #tpu.core_type<tc>, window_params = [{transform_indices = @transform_0, window_bounds = array<i64: 8, 32>}, {transform_indices = @transform_1, window_bounds = array<i64: 8, 32>}, {transform_indices = @transform_2, window_bounds = array<i64: 8, 1>}, {pipeline_mode = #tpu.pipeline_mode<synchronous>, transform_indices = @transform_3, window_bounds = array<i64: 32, 128>}, {pipeline_mode = #tpu.pipeline_mode<synchronous>, transform_indices = @transform_4, window_bounds = array<i64: 32, 128>}, {pipeline_mode = #tpu.pipeline_mode<synchronous>, transform_indices = @transform_5, window_bounds = array<i64: 8, 128>}, {pipeline_mode = #tpu.pipeline_mode<synchronous>, transform_indices = @transform_6, window_bounds = array<i64: 1, 128>}, {pipeline_mode = #tpu.pipeline_mode<synchronous>, transform_indices = @transform_7, window_bounds = array<i64: 128, 128>}, {pipeline_mode = #tpu.pipeline_mode<synchronous>, transform_indices = @transform_8, window_bounds = array<i64: 1, 128>}, {transform_indices = @transform_9, window_bounds = array<i64: 8, 32>}, {transform_indices = @transform_10, window_bounds = array<i64: 8, 4>}]} {
    %c0 = arith.constant 0 : index
    %c0_0 = arith.constant 0 : index
    %0 = vector.load %arg1[%c0, %c0_0] : memref<8x32xf32, #tpu.memory_space<vmem>>, vector<8x32xf32>
    %c0_1 = arith.constant 0 : index
    %c0_2 = arith.constant 0 : index
    %1 = vector.load %arg2[%c0_1, %c0_2] : memref<8x32xf32, #tpu.memory_space<vmem>>, vector<8x32xf32>
    %c0_3 = arith.constant 0 : index
    %c0_4 = arith.constant 0 : index
    %2 = vector.load %arg3[%c0_3, %c0_4] : memref<8x1xi32, #tpu.memory_space<vmem>>, vector<8x1xi32>
    %3 = tpu.iota {dimensions = array<i32: 1>} : vector<8x8xi32>
    %4 = vector.broadcast %2 : vector<8x1xi32> to vector<8x8xi32>
    %5 = arith.cmpi eq, %3, %4 : vector<8x8xi32>
    %6 = arith.extui %5 : vector<8x8xi1> to vector<8x8xi32>
    %7 = arith.sitofp %6 : vector<8x8xi32> to vector<8x8xf32>
    %c0_5 = arith.constant 0 : index
    %c0_6 = arith.constant 0 : index
    %8 = vector.load %arg4[%c0_5, %c0_6] : memref<32x128xf32, #tpu.memory_space<vmem>>, vector<32x128xf32>
    %cst = arith.constant dense<0.000000e+00> : vector<8x128xf32>
    %9 = tpu.matmul %0, %8, %cst {dimension_numbers = #tpu.dot_dimension_numbers<[1], [0], [0], [1], [0, 0, 1, 1], [], []>, precision = #tpu.contract_precision<fp32>} : vector<8x32xf32>, vector<32x128xf32>, vector<8x128xf32> -> vector<8x128xf32>
    %c0_7 = arith.constant 0 : index
    %c0_8 = arith.constant 0 : index
    %10 = vector.load %arg5[%c0_7, %c0_8] : memref<32x128xf32, #tpu.memory_space<vmem>>, vector<32x128xf32>
    %cst_9 = arith.constant dense<0.000000e+00> : vector<8x128xf32>
    %11 = tpu.matmul %1, %10, %cst_9 {dimension_numbers = #tpu.dot_dimension_numbers<[1], [0], [0], [1], [0, 0, 1, 1], [], []>, precision = #tpu.contract_precision<fp32>} : vector<8x32xf32>, vector<32x128xf32>, vector<8x128xf32> -> vector<8x128xf32>
    %12 = arith.addf %9, %11 : vector<8x128xf32>
    %c0_10 = arith.constant 0 : index
    %c0_11 = arith.constant 0 : index
    %13 = vector.load %arg6[%c0_10, %c0_11] : memref<8x128xf32, #tpu.memory_space<vmem>>, vector<8x128xf32>
    %cst_12 = arith.constant dense<0.000000e+00> : vector<8x128xf32>
    %14 = tpu.matmul %7, %13, %cst_12 {dimension_numbers = #tpu.dot_dimension_numbers<[1], [0], [0], [1], [0, 0, 1, 1], [], []>, precision = #tpu.contract_precision<fp32>} : vector<8x8xf32>, vector<8x128xf32>, vector<8x128xf32> -> vector<8x128xf32>
    %15 = arith.addf %12, %14 : vector<8x128xf32>
    %c0_13 = arith.constant 0 : index
    %c0_14 = arith.constant 0 : index
    %16 = vector.load %arg7[%c0_13, %c0_14] : memref<1x128xf32, #tpu.memory_space<vmem>>, vector<1x128xf32>
    %17 = vector.broadcast %16 : vector<1x128xf32> to vector<8x128xf32>
    %18 = arith.addf %15, %17 : vector<8x128xf32>
    %cst_15 = arith.constant 0.000000e+00 : f32
    %19 = vector.broadcast %cst_15 : f32 to vector<8x128xf32>
    %20 = arith.maximumf %18, %19 : vector<8x128xf32>
    %c0_16 = arith.constant 0 : index
    %c0_17 = arith.constant 0 : index
    %21 = vector.load %arg8[%c0_16, %c0_17] : memref<128x128xf32, #tpu.memory_space<vmem>>, vector<128x128xf32>
    %cst_18 = arith.constant dense<0.000000e+00> : vector<8x128xf32>
    %22 = tpu.matmul %20, %21, %cst_18 {dimension_numbers = #tpu.dot_dimension_numbers<[1], [0], [0], [1], [0, 0, 1, 1], [], []>, precision = #tpu.contract_precision<fp32>} : vector<8x128xf32>, vector<128x128xf32>, vector<8x128xf32> -> vector<8x128xf32>
    %c0_19 = arith.constant 0 : index
    %c0_20 = arith.constant 0 : index
    %23 = vector.load %arg9[%c0_19, %c0_20] : memref<1x128xf32, #tpu.memory_space<vmem>>, vector<1x128xf32>
    %24 = vector.broadcast %23 : vector<1x128xf32> to vector<8x128xf32>
    %25 = arith.addf %22, %24 : vector<8x128xf32>
    %26 = vector.extract_strided_slice %25 {offsets = [0, 0], sizes = [8, 32], strides = [1, 1]} : vector<8x128xf32> to vector<8x32xf32>
    %c0_21 = arith.constant 0 : index
    %c0_22 = arith.constant 0 : index
    %27 = vector.load %arg10[%c0_21, %c0_22] : memref<8x32xf32, #tpu.memory_space<vmem>>, vector<8x32xf32>
    tpu.vector_store %arg10[%c0_21, %c0_22], %26 {strides = array<i32>} : memref<8x32xf32, #tpu.memory_space<vmem>>, vector<8x32xf32>,
    %28 = vector.extract_strided_slice %25 {offsets = [0, 32], sizes = [8, 4], strides = [1, 1]} : vector<8x128xf32> to vector<8x4xf32>
    %c0_23 = arith.constant 0 : index
    %c0_24 = arith.constant 0 : index
    %29 = vector.load %arg11[%c0_23, %c0_24] : memref<8x4xf32, #tpu.memory_space<vmem>>, vector<8x4xf32>
    tpu.vector_store %arg11[%c0_23, %c0_24], %28 {strides = array<i32>} : memref<8x4xf32, #tpu.memory_space<vmem>>, vector<8x4xf32>,
    return
  }
  func.func @transform_0(%arg0: i32) -> (i32, i32) {
    %c0_i32 = arith.constant 0 : i32
    %c0_i32_0 = arith.constant 0 : i32
    return %arg0, %c0_i32 : i32, i32
  }
  func.func @transform_1(%arg0: i32) -> (i32, i32) {
    %c0_i32 = arith.constant 0 : i32
    %c0_i32_0 = arith.constant 0 : i32
    return %arg0, %c0_i32 : i32, i32
  }
  func.func @transform_2(%arg0: i32) -> (i32, i32) {
    %c0_i32 = arith.constant 0 : i32
    %c0_i32_0 = arith.constant 0 : i32
    return %arg0, %c0_i32 : i32, i32
  }
  func.func @transform_3(%arg0: i32) -> (i32, i32) {
    %c0_i32 = arith.constant 0 : i32
    %c0_i32_0 = arith.constant 0 : i32
    %c0_i32_1 = arith.constant 0 : i32
    return %c0_i32, %c0_i32_0 : i32, i32
  }
  func.func @transform_4(%arg0: i32) -> (i32, i32) {
    %c0_i32 = arith.constant 0 : i32
    %c0_i32_0 = arith.constant 0 : i32
    %c0_i32_1 = arith.constant 0 : i32
    return %c0_i32, %c0_i32_0 : i32, i32
  }
  func.func @transform_5(%arg0: i32) -> (i32, i32) {
    %c0_i32 = arith.constant 0 : i32
    %c0_i32_0 = arith.constant 0 : i32
    %c0_i32_1 = arith.constant 0 : i32
    return %c0_i32, %c0_i32_0 : i32, i32
  }
  func.func @transform_6(%arg0: i32) -> (i32, i32) {
    %c0_i32 = arith.constant 0 : i32
    %c0_i32_0 = arith.constant 0 : i32
    %c0_i32_1 = arith.constant 0 : i32
    return %c0_i32, %c0_i32_0 : i32, i32
  }
  func.func @transform_7(%arg0: i32) -> (i32, i32) {
    %c0_i32 = arith.constant 0 : i32
    %c0_i32_0 = arith.constant 0 : i32
    %c0_i32_1 = arith.constant 0 : i32
    return %c0_i32, %c0_i32_0 : i32, i32
  }
  func.func @transform_8(%arg0: i32) -> (i32, i32) {
    %c0_i32 = arith.constant 0 : i32
    %c0_i32_0 = arith.constant 0 : i32
    %c0_i32_1 = arith.constant 0 : i32
    return %c0_i32, %c0_i32_0 : i32, i32
  }
  func.func @transform_9(%arg0: i32) -> (i32, i32) {
    %c0_i32 = arith.constant 0 : i32
    %c0_i32_0 = arith.constant 0 : i32
    return %arg0, %c0_i32 : i32, i32
  }
  func.func @transform_10(%arg0: i32) -> (i32, i32) {
    %c0_i32 = arith.constant 0 : i32
    %c0_i32_0 = arith.constant 0 : i32
    return %arg0, %c0_i32 : i32, i32
  }
}

</mosaic_0001>

<llo_original>
// kernel: icm_output_heads.1
$region0: #{icm_output_heads.1}
  #allocation0 [shape = 'u32[]', space=smem, size = 0x4, offset = 0x4, fixed_abs, tag = 'smem constant byte address 0x4 - core index']
  #allocation1 [shape = 'u32[144,128]{1,0:T(1,128)}', space=vmem, size = 0x12000, scoped, tag = 'internal scratch']
  %s0 = inlined_call_operand.vmem [shape: f32[8,32], index: 0, kind: input, shape index: {}]
  %s1 = inlined_call_operand.vmem [shape: f32[8,32], index: 1, kind: input, shape index: {}]
  %s2 = inlined_call_operand.vmem [shape: s32[8,1], index: 2, kind: input, shape index: {}]
  %s3 = inlined_call_operand.hbm [shape: f32[32,128], index: 3, kind: input, shape index: {}]
  %s4 = inlined_call_operand.hbm [shape: f32[32,128], index: 4, kind: input, shape index: {}]
  %s5 = inlined_call_operand.hbm [shape: f32[8,128], index: 5, kind: input, shape index: {}]
  %s6 = inlined_call_operand.hbm [shape: f32[1,128], index: 6, kind: input, shape index: {}]
  %s7 = inlined_call_operand.hbm [shape: f32[128,128], index: 7, kind: input, shape index: {}]
  %s8 = inlined_call_operand.hbm [shape: f32[1,128], index: 8, kind: input, shape index: {}]
  %s9 = inlined_call_operand.hbm [shape: f32[8,32], index: 9, kind: output, shape index: {0}]
  %s10 = inlined_call_operand.vmem [shape: f32[8,4], index: 10, kind: output, shape index: {1}]
  %11 = xla_tuple %s9, %s10
  %s12 = sld [smem:[#allocation0]]
  $region78: #{icm_output_heads.1} parent=0
    _
  %s14 = ssub.s32 1, %s12
  %s15 = scalar_select 0, %s14, %s12
  $region1: #{icm_output_heads.1} parent=0
    #allocation2 [shape = 'u8[16384]{0}', space=vmem, size = 0x4000, scoped, tag = 'input window, operand 3, single buffered']
    #allocation3 [shape = 's32[1]{0}', space=sflag, size = 0x4, scoped, tag = 'scoped memory for icm_output_heads.1']
    #allocation4 [shape = 's32[1]{0}', space=sflag, size = 0x4, scoped, tag = 'scoped memory for icm_output_heads.1']
    #allocation5 [shape = 'u8[16384]{0}', space=vmem, size = 0x4000, scoped, tag = 'input window, operand 4, single buffered']
    #allocation6 [shape = 's32[1]{0}', space=sflag, size = 0x4, scoped, tag = 'scoped memory for icm_output_heads.1']
    #allocation7 [shape = 'u8[4096]{0}', space=vmem, size = 0x1000, scoped, tag = 'input window, operand 5, single buffered']
    #allocation8 [shape = 'u8[512]{0}', space=vmem, size = 0x400, scoped, tag = 'input window, operand 6, single buffered']
    #allocation9 [shape = 's32[1]{0}', space=sflag, size = 0x4, scoped, tag = 'scoped memory for icm_output_heads.1']
    #allocation10 [shape = 'u8[65536]{0}', space=vmem, size = 0x10000, scoped, tag = 'input window, operand 7, single buffered']
    #allocation11 [shape = 'u8[512]{0}', space=vmem, size = 0x400, scoped, tag = 'input window, operand 8, single buffered']
    #allocation12 [shape = 's32[1]{0}', space=sflag, size = 0x4, scoped, tag = 'scoped memory for icm_output_heads.1']
    #allocation13 [shape = 'u8[4096]{0}', space=vmem, size = 0x1000, scoped, tag = 'output window, operand 0, single buffered']
    %16 = vsyncpa [#allocation3], 0
    %17 = vsyncpa [#allocation6], 0
    %18 = vsyncpa [#allocation9], 0
    %19 = vsyncpa [#allocation12], 0
    %20 = vsyncpa [#allocation4], 0
    // Predicated region
    $region2: #{icm_output_heads.1} parent=1 // pred_check
      _
    $region3: #{icm_output_heads.1} parent=1 // pred_check_branch
      %22 = sbr.rel (0) target = $region5
    $region4: #{icm_output_heads.1} parent=1 // pred_region
      _
    $region5: #{icm_output_heads.1} parent=1 // pred_fallthru
      _
    // Predicated region
    $region6: #{icm_output_heads.1} parent=1 // pred_check
      _
    $region7: #{icm_output_heads.1} parent=1 // pred_check_branch
      %24 = sbr.rel (0) target = $region9
    $region8: #{icm_output_heads.1} parent=1 // pred_region
      _
    $region9: #{icm_output_heads.1} parent=1 // pred_fallthru
      _
    // Predicated region
    $region10: #{icm_output_heads.1} parent=1 // pred_check
      _
    $region11: #{icm_output_heads.1} parent=1 // pred_check_branch
      %26 = sbr.rel (0) target = $region13
    $region12: #{icm_output_heads.1} parent=1 // pred_region
      _
    $region13: #{icm_output_heads.1} parent=1 // pred_fallthru
      _
    // Predicated region
    $region14: #{icm_output_heads.1} parent=1 // pred_check
      _
    $region15: #{icm_output_heads.1} parent=1 // pred_check_branch
      %28 = sbr.rel (0) target = $region17
    $region16: #{icm_output_heads.1} parent=1 // pred_region
      %s30 = ssub.s32 512, 512
      %31 = vsyncadd [#allocation3], %s30
      %s32 = sshll.u32 [#allocation2], 4
      %s33 = int_to_ptr.vmem [resolvable:$true] %s32
      %38 = dma.hbm_to_vmem [thread:$0]  %s3, 512, %s33, [#allocation3], 128, 128, 8
    $region17: #{icm_output_heads.1} parent=1 // pred_fallthru
      _
    // Predicated region
    $region18: #{icm_output_heads.1} parent=1 // pred_check
      _
    $region19: #{icm_output_heads.1} parent=1 // pred_check_branch
      %40 = sbr.rel (0) target = $region21
    $region20: #{icm_output_heads.1} parent=1 // pred_region
      %s42 = ssub.s32 512, 512
      %43 = vsyncadd [#allocation6], %s42
      %s44 = sshll.u32 [#allocation5], 4
      %s45 = int_to_ptr.vmem [resolvable:$true] %s44
      %50 = dma.hbm_to_vmem [thread:$0]  %s4, 512, %s45, [#allocation6], 128, 128, 8
    $region21: #{icm_output_heads.1} parent=1 // pred_fallthru
      _
    // Predicated region
    $region22: #{icm_output_heads.1} parent=1 // pred_check
      _
    $region23: #{icm_output_heads.1} parent=1 // pred_check_branch
      %52 = sbr.rel (0) target = $region25
    $region24: #{icm_output_heads.1} parent=1 // pred_region
      %s54 = ssub.s32 128, 128
      %55 = vsyncadd [#allocation6], %s54
      %s57 = sshll.u32 [#allocation7], 4
      %s58 = int_to_ptr.vmem [resolvable:$true] %s57
      %60 = dma.hbm_to_vmem [thread:$0]  %s5, 128, %s58, [#allocation6]
    $region25: #{icm_output_heads.1} parent=1 // pred_fallthru
      _
    // Predicated region
    $region26: #{icm_output_heads.1} parent=1 // pred_check
      _
    $region27: #{icm_output_heads.1} parent=1 // pred_check_branch
      %62 = sbr.rel (0) target = $region29
    $region28: #{icm_output_heads.1} parent=1 // pred_region
      %s64 = ssub.s32 16, 16
      %65 = vsyncadd [#allocation9], %s64
      %s67 = sshll.u32 [#allocation8], 4
      %s68 = int_to_ptr.vmem [resolvable:$true] %s67
      %70 = dma.hbm_to_vmem [thread:$0]  %s6, 16, %s68, [#allocation9]
    $region29: #{icm_output_heads.1} parent=1 // pred_fallthru
      _
    // Predicated region
    $region30: #{icm_output_heads.1} parent=1 // pred_check
      _
    $region31: #{icm_output_heads.1} parent=1 // pred_check_branch
      %72 = sbr.rel (0) target = $region33
    $region32: #{icm_output_heads.1} parent=1 // pred_region
      %s74 = ssub.s32 2048, 2048
      %75 = vsyncadd [#allocation9], %s74
      %s76 = sshll.u32 [#allocation10], 4
      %s77 = int_to_ptr.vmem [resolvable:$true] %s76
      %82 = dma.hbm_to_vmem [thread:$0]  %s7, 2048, %s77, [#allocation9], 128, 128, 8
    $region33: #{icm_output_heads.1} parent=1 // pred_fallthru
      _
    // Predicated region
    $region34: #{icm_output_heads.1} parent=1 // pred_check
      _
    $region35: #{icm_output_heads.1} parent=1 // pred_check_branch
      %84 = sbr.rel (0) target = $region37
    $region36: #{icm_output_heads.1} parent=1 // pred_region
      %s86 = ssub.s32 16, 16
      %87 = vsyncadd [#allocation12], %s86
      %s89 = sshll.u32 [#allocation11], 4
      %s90 = int_to_ptr.vmem [resolvable:$true] %s89
      %92 = dma.hbm_to_vmem [thread:$0]  %s8, 16, %s90, [#allocation12]
    $region37: #{icm_output_heads.1} parent=1 // pred_fallthru
      _
    // Predicated region
    $region38: #{icm_output_heads.1} parent=1 // pred_check
      _
    $region39: #{icm_output_heads.1} parent=1 // pred_check_branch
      %94 = sbr.rel (0) target = $region41
    $region40: #{icm_output_heads.1} parent=1 // pred_region
      %95 = dma.done [#allocation3], 512
    $region41: #{icm_output_heads.1} parent=1 // pred_fallthru
      _
    // Predicated region
    $region42: #{icm_output_heads.1} parent=1 // pred_check
      _
    $region43: #{icm_output_heads.1} parent=1 // pred_check_branch
      %97 = sbr.rel (0) target = $region45
    $region44: #{icm_output_heads.1} parent=1 // pred_region
      %98 = dma.done [#allocation6], 512
    $region45: #{icm_output_heads.1} parent=1 // pred_fallthru
      _
    // Predicated region
    $region46: #{icm_output_heads.1} parent=1 // pred_check
      _
    $region47: #{icm_output_heads.1} parent=1 // pred_check_branch
      %100 = sbr.rel (0) target = $region49
    $region48: #{icm_output_heads.1} parent=1 // pred_region
      %101 = dma.done [#allocation6], 128
    $region49: #{icm_output_heads.1} parent=1 // pred_fallthru
      _
    // Predicated region
    $region50: #{icm_output_heads.1} parent=1 // pred_check
      _
    $region51: #{icm_output_heads.1} parent=1 // pred_check_branch
      %103 = sbr.rel (0) target = $region53
    $region52: #{icm_output_heads.1} parent=1 // pred_region
      %104 = dma.done [#allocation9], 16
    $region53: #{icm_output_heads.1} parent=1 // pred_fallthru
      _
    // Predicated region
    $region54: #{icm_output_heads.1} parent=1 // pred_check
      _
    $region55: #{icm_output_heads.1} parent=1 // pred_check_branch
      %106 = sbr.rel (0) target = $region57
    $region56: #{icm_output_heads.1} parent=1 // pred_region
      %107 = dma.done [#allocation9], 2048
    $region57: #{icm_output_heads.1} parent=1 // pred_fallthru
      _
    // Predicated region
    $region58: #{icm_output_heads.1} parent=1 // pred_check
      _
    $region59: #{icm_output_heads.1} parent=1 // pred_check_branch
      %109 = sbr.rel (0) target = $region61
    $region60: #{icm_output_heads.1} parent=1 // pred_region
      %110 = dma.done [#allocation12], 16
    $region61: #{icm_output_heads.1} parent=1 // pred_fallthru
      _
    %v111 = vld [vmem:[%s0] sm:$0xff]
    %v112 = vld [vmem:[%s1] sm:$0xff]
    %v113 = vld [vmem:[%s2] sm:$0xff]
    %v114 = vlaneseq
    %v115 = vand.u32 %v114, 127
    %116 = vset.pattern.permute.xlu0 0
    %117 = vperm.xlu0 %116, %v113
    %v118 = vpop.permute.xlu0 %117
    %vm119 = vcmp.eq.s32.totalorder %v115, %v118
    %v120 = vsel %vm119, 1, 0
    %v121 = vcvt.s32.f32 %v120
    %v122 = vld [vmem:[#allocation2] sm:$0xff]
    %v123 = vld [vmem:[#allocation2 + $0x8] sm:$0xff]
    %v124 = vld [vmem:[#allocation2 + $0x10] sm:$0xff]
    %v125 = vld [vmem:[#allocation2 + $0x18] sm:$0xff]
    %v126 = vld [vmem:[#allocation5] sm:$0xff]
    %v127 = vld [vmem:[#allocation5 + $0x8] sm:$0xff]
    %v128 = vld [vmem:[#allocation5 + $0x10] sm:$0xff]
    %v129 = vld [vmem:[#allocation5 + $0x18] sm:$0xff]
    %vm130 = vcmask 261120
    %v132 = vsel %vm130, %v112, 0
    %134 = vmatprep.subr.mxu0 0.0
    %v135 = vand.u32 %v126, 4294901760
    %136 = vmatpush1.msra.mxu0 %v135
    %137 = vmatprep.subr.mxu0 0.0
    %v138 = vand.u32 %v127, 4294901760
    %139 = vmatpush1.msra.mxu0 %v138
    %140 = vmatprep.subr.mxu0 0.0
    %v141 = vand.u32 %v128, 4294901760
    %142 = vmatpush1.msra.mxu0 %v141
    %143 = vmatprep.subr.mxu0 0.0
    %v144 = vand.u32 %v129, 4294901760
    %145 = vmatpush1.msra.mxu0 %v144
    %146 = vmatprep.subr.mxu0 0.0
    %147 = vmatpush1.msra.mxu0 0.0
    %148 = vmatprep.subr.mxu0 0.0
    %149 = vmatpush1.msra.mxu0 0.0
    %150 = vmatprep.subr.mxu0 0.0
    %151 = vmatpush1.msra.mxu0 0.0
    %152 = vmatprep.subr.mxu0 0.0
    %153 = vmatpush1.msra.mxu0 0.0
    %154 = vmatprep.subr.mxu0 0.0
    %155 = vmatpush1.msra.mxu0 0.0
    %156 = vmatprep.subr.mxu0 0.0
    %157 = vmatpush1.msra.mxu0 0.0
    %158 = vmatprep.subr.mxu0 0.0
    %159 = vmatpush1.msra.mxu0 0.0
    %160 = vmatprep.subr.mxu0 0.0
    %161 = vmatpush1.msra.mxu0 0.0
    %162 = vmatprep.subr.mxu0 0.0
    %163 = vmatpush1.msra.mxu0 0.0
    %164 = vmatprep.subr.mxu0 0.0
    %165 = vmatpush1.msra.mxu0 0.0
    %166 = vmatprep.subr.mxu0 0.0
    %167 = vmatpush1.msra.mxu0 0.0
    %168 = vmatprep.subr.mxu0 0.0
    %169 = vmatpush1.msra.mxu0 0.0
    %170 = vmatprep.subr.mxu0 0.0
    %171 = vmatpush1.msra.mxu0 0.0
    %172 = vmatprep.subr.mxu0 0.0
    %173 = vmatpush1.msra.mxu0 0.0
    %174 = vmatprep.subr.mxu0 0.0
    %175 = vmatpush1.msra.mxu0 0.0
    %176 = vmatprep.subr.mxu0 0.0
    %177 = vmatpush1.msra.mxu0 0.0
    %178 = vmatprep.subr.mxu0 0.0
    %179 = vmatpush1.msra.mxu0 0.0
    %180 = vmatprep.subr.mxu0 0.0
    %181 = vmatpush1.msra.mxu0 0.0
    %182 = vmatprep.subr.mxu0 0.0
    %183 = vmatpush1.msra.mxu0 0.0
    %184 = vmatprep.subr.mxu0 0.0
    %185 = vmatpush1.msra.mxu0 0.0
    %186 = vmatprep.subr.mxu0 0.0
    %187 = vmatpush1.msra.mxu0 0.0
    %188 = vmatprep.subr.mxu0 0.0
    %189 = vmatpush1.msra.mxu0 0.0
    %190 = vmatprep.subr.mxu0 0.0
    %191 = vmatpush1.msra.mxu0 0.0
    %192 = vmatprep.subr.mxu0 0.0
    %193 = vmatpush1.msra.mxu0 0.0
    %194 = vmatprep.subr.mxu0 0.0
    %195 = vmatpush1.msra.mxu0 0.0
    %196 = vmatprep.subr.mxu0 0.0
    %197 = vmatpush1.msra.mxu0 0.0
    %198 = vmatprep.subr.mxu0 0.0
    %199 = vmatpush1.msra.mxu0 0.0
    %200 = vmatprep.subr.mxu0 0.0
    %201 = vmatpush1.msra.mxu0 0.0
    %202 = vmatprep.mubr.f32.mxu0 0.0
    %v203 = vand.u32 %v132, 4294901760
    %v204 = vsub.f32 %v132, %v203
    %v205 = vand.u32 %v204, 4294901760
    %v206 = vsub.f32 %v204, %v205
    %v207 = vand.u32 %v206, 4294901760
    %208 = vmatmul.mubr.f32.gmra.mrb[0].mxu0 %v207
    %v209 = vpop.f32.mrb[0].mxu0
    %v210 = vadd.f32 0.0, %v209
    %v211 = vpop.f32.mrb[0].mxu0
    %212 = vdwg.mxu0
    %213 = vmatprep.subr.mxu0 0.0
    %v214 = vand.u32 %v126, 4294901760
    %v215 = vsub.f32 %v126, %v214
    %v216 = vand.u32 %v215, 4294901760
    %v217 = vsub.f32 %v215, %v216
    %v218 = vand.u32 %v217, 4294901760
    %219 = vmatpush1.msra.mxu0 %v218
    %220 = vmatprep.subr.mxu0 0.0
    %v221 = vand.u32 %v127, 4294901760
    %v222 = vsub.f32 %v127, %v221
    %v223 = vand.u32 %v222, 4294901760
    %v224 = vsub.f32 %v222, %v223
    %v225 = vand.u32 %v224, 4294901760
    %226 = vmatpush1.msra.mxu0 %v225
    %227 = vmatprep.subr.mxu0 0.0
    %v228 = vand.u32 %v128, 4294901760
    %v229 = vsub.f32 %v128, %v228
    %v230 = vand.u32 %v229, 4294901760
    %v231 = vsub.f32 %v229, %v230
    %v232 = vand.u32 %v231, 4294901760
    %233 = vmatpush1.msra.mxu0 %v232
    %234 = vmatprep.subr.mxu0 0.0
    %v235 = vand.u32 %v129, 4294901760
    %v236 = vsub.f32 %v129, %v235
    %v237 = vand.u32 %v236, 4294901760
    %v238 = vsub.f32 %v236, %v237
    %v239 = vand.u32 %v238, 4294901760
    %240 = vmatpush1.msra.mxu0 %v239
    %241 = vmatprep.subr.mxu0 0.0
    %242 = vmatpush1.msra.mxu0 0.0
    %243 = vmatprep.subr.mxu0 0.0
    %244 = vmatpush1.msra.mxu0 0.0
    %245 = vmatprep.subr.mxu0 0.0
    %246 = vmatpush1.msra.mxu0 0.0
    %247 = vmatprep.subr.mxu0 0.0
    %248 = vmatpush1.msra.mxu0 0.0
    %249 = vmatprep.subr.mxu0 0.0
    %250 = vmatpush1.msra.mxu0 0.0
    %251 = vmatprep.subr.mxu0 0.0
    %252 = vmatpush1.msra.mxu0 0.0
    %253 = vmatprep.subr.mxu0 0.0
    %254 = vmatpush1.msra.mxu0 0.0
    %255 = vmatprep.subr.mxu0 0.0
    %256 = vmatpush1.msra.mxu0 0.0
    %257 = vmatprep.subr.mxu0 0.0
    %258 = vmatpush1.msra.mxu0 0.0
    %259 = vmatprep.subr.mxu0 0.0
    %260 = vmatpush1.msra.mxu0 0.0
    %261 = vmatprep.subr.mxu0 0.0
    %262 = vmatpush1.msra.mxu0 0.0
    %263 = vmatprep.subr.mxu0 0.0
    %264 = vmatpush1.msra.mxu0 0.0
    %265 = vmatprep.subr.mxu0 0.0
    %266 = vmatpush1.msra.mxu0 0.0
    %267 = vmatprep.subr.mxu0 0.0
    %268 = vmatpush1.msra.mxu0 0.0
    %269 = vmatprep.subr.mxu0 0.0
    %270 = vmatpush1.msra.mxu0 0.0
    %271 = vmatprep.subr.mxu0 0.0
    %272 = vmatpush1.msra.mxu0 0.0
    %273 = vmatprep.subr.mxu0 0.0
    %274 = vmatpush1.msra.mxu0 0.0
    %275 = vmatprep.subr.mxu0 0.0
    %276 = vmatpush1.msra.mxu0 0.0
    %277 = vmatprep.subr.mxu0 0.0
    %278 = vmatpush1.msra.mxu0 0.0
    %279 = vmatprep.subr.mxu0 0.0
    %280 = vmatpush1.msra.mxu0 0.0
    %281 = vmatprep.subr.mxu0 0.0
    %282 = vmatpush1.msra.mxu0 0.0
    %283 = vmatprep.subr.mxu0 0.0
    %284 = vmatpush1.msra.mxu0 0.0
    %285 = vmatprep.subr.mxu0 0.0
    %286 = vmatpush1.msra.mxu0 0.0
    %287 = vmatprep.subr.mxu0 0.0
    %288 = vmatpush1.msra.mxu0 0.0
    %289 = vmatprep.subr.mxu0 0.0
    %290 = vmatpush1.msra.mxu0 0.0
    %291 = vmatprep.subr.mxu0 0.0
    %292 = vmatpush1.msra.mxu0 0.0
    %293 = vmatprep.subr.mxu0 0.0
    %294 = vmatpush1.msra.mxu0 0.0
    %295 = vmatprep.subr.mxu0 0.0
    %296 = vmatpush1.msra.mxu0 0.0
    %297 = vmatprep.mubr.f32.mxu0 0.0
    %v298 = vand.u32 %v132, 4294901760
    %299 = vmatmul.mubr.f32.gmra.mrb[0].mxu0 %v298
    %v300 = vpop.f32.mrb[0].mxu0
    %v301 = vadd.f32 %v210, %v300
    %v302 = vpop.f32.mrb[0].mxu0
    %303 = vdwg.mxu0
    %304 = vmatprep.subr.mxu0 0.0
    %v305 = vand.u32 %v126, 4294901760
    %v306 = vsub.f32 %v126, %v305
    %307 = vmatpush1.msra.mxu0 %v306
    %308 = vmatprep.subr.mxu0 0.0
    %v309 = vand.u32 %v127, 4294901760
    %v310 = vsub.f32 %v127, %v309
    %311 = vmatpush1.msra.mxu0 %v310
    %312 = vmatprep.subr.mxu0 0.0
    %v313 = vand.u32 %v128, 4294901760
    %v314 = vsub.f32 %v128, %v313
    %315 = vmatpush1.msra.mxu0 %v314
    %316 = vmatprep.subr.mxu0 0.0
    %v317 = vand.u32 %v129, 4294901760
    %v318 = vsub.f32 %v129, %v317
    %319 = vmatpush1.msra.mxu0 %v318
    %320 = vmatprep.subr.mxu0 0.0
    %321 = vmatpush1.msra.mxu0 0.0
    %322 = vmatprep.subr.mxu0 0.0
    %323 = vmatpush1.msra.mxu0 0.0
    %324 = vmatprep.subr.mxu0 0.0
    %325 = vmatpush1.msra.mxu0 0.0
    %326 = vmatprep.subr.mxu0 0.0
    %327 = vmatpush1.msra.mxu0 0.0
    %328 = vmatprep.subr.mxu0 0.0
    %329 = vmatpush1.msra.mxu0 0.0
    %330 = vmatprep.subr.mxu0 0.0
    %331 = vmatpush1.msra.mxu0 0.0
    %332 = vmatprep.subr.mxu0 0.0
    %333 = vmatpush1.msra.mxu0 0.0
    %334 = vmatprep.subr.mxu0 0.0
    %335 = vmatpush1.msra.mxu0 0.0
    %336 = vmatprep.subr.mxu0 0.0
    %337 = vmatpush1.msra.mxu0 0.0
    %338 = vmatprep.subr.mxu0 0.0
    %339 = vmatpush1.msra.mxu0 0.0
    %340 = vmatprep.subr.mxu0 0.0
    %341 = vmatpush1.msra.mxu0 0.0
    %342 = vmatprep.subr.mxu0 0.0
    %343 = vmatpush1.msra.mxu0 0.0
    %344 = vmatprep.subr.mxu0 0.0
    %345 = vmatpush1.msra.mxu0 0.0
    %346 = vmatprep.subr.mxu0 0.0
    %347 = vmatpush1.msra.mxu0 0.0
    %348 = vmatprep.subr.mxu0 0.0
    %349 = vmatpush1.msra.mxu0 0.0
    %350 = vmatprep.subr.mxu0 0.0
    %351 = vmatpush1.msra.mxu0 0.0
    %352 = vmatprep.subr.mxu0 0.0
    %353 = vmatpush1.msra.mxu0 0.0
    %354 = vmatprep.subr.mxu0 0.0
    %355 = vmatpush1.msra.mxu0 0.0
    %356 = vmatprep.subr.mxu0 0.0
    %357 = vmatpush1.msra.mxu0 0.0
    %358 = vmatprep.subr.mxu0 0.0
    %359 = vmatpush1.msra.mxu0 0.0
    %360 = vmatprep.subr.mxu0 0.0
    %361 = vmatpush1.msra.mxu0 0.0
    %362 = vmatprep.subr.mxu0 0.0
    %363 = vmatpush1.msra.mxu0 0.0
    %364 = vmatprep.subr.mxu0 0.0
    %365 = vmatpush1.msra.mxu0 0.0
    %366 = vmatprep.subr.mxu0 0.0
    %367 = vmatpush1.msra.mxu0 0.0
    %368 = vmatprep.subr.mxu0 0.0
    %369 = vmatpush1.msra.mxu0 0.0
    %370 = vmatprep.subr.mxu0 0.0
    %371 = vmatpush1.msra.mxu0 0.0
    %372 = vmatprep.subr.mxu0 0.0
    %373 = vmatpush1.msra.mxu0 0.0
    %374 = vmatprep.subr.mxu0 0.0
    %375 = vmatpush1.msra.mxu0 0.0
    %376 = vmatprep.mubr.f32.mxu0 0.0
    %v377 = vand.u32 %v132, 4294901760
    %v378 = vsub.f32 %v132, %v377
    %379 = vmatmul.mubr.f32.gmra.mrb[0].mxu0 %v378
    %v380 = vpop.f32.mrb[0].mxu0
    %v381 = vadd.f32 %v301, %v380
    %v382 = vpop.f32.mrb[0].mxu0
    %383 = vdwg.mxu0
    %384 = vmatprep.subr.mxu0 0.0
    %v385 = vand.u32 %v126, 4294901760
    %386 = vmatpush1.msra.mxu0 %v385
    %387 = vmatprep.subr.mxu0 0.0
    %v388 = vand.u32 %v127, 4294901760
    %389 = vmatpush1.msra.mxu0 %v388
    %390 = vmatprep.subr.mxu0 0.0
    %v391 = vand.u32 %v128, 4294901760
    %392 = vmatpush1.msra.mxu0 %v391
    %393 = vmatprep.subr.mxu0 0.0
    %v394 = vand.u32 %v129, 4294901760
    %395 = vmatpush1.msra.mxu0 %v394
    %396 = vmatprep.subr.mxu0 0.0
    %397 = vmatpush1.msra.mxu0 0.0
    %398 = vmatprep.subr.mxu0 0.0
    %399 = vmatpush1.msra.mxu0 0.0
    %400 = vmatprep.subr.mxu0 0.0
    %401 = vmatpush1.msra.mxu0 0.0
    %402 = vmatprep.subr.mxu0 0.0
    %403 = vmatpush1.msra.mxu0 0.0
    %404 = vmatprep.subr.mxu0 0.0
    %405 = vmatpush1.msra.mxu0 0.0
    %406 = vmatprep.subr.mxu0 0.0
    %407 = vmatpush1.msra.mxu0 0.0
    %408 = vmatprep.subr.mxu0 0.0
    %409 = vmatpush1.msra.mxu0 0.0
    %410 = vmatprep.subr.mxu0 0.0
    %411 = vmatpush1.msra.mxu0 0.0
    %412 = vmatprep.subr.mxu0 0.0
    %413 = vmatpush1.msra.mxu0 0.0
    %414 = vmatprep.subr.mxu0 0.0
    %415 = vmatpush1.msra.mxu0 0.0
    %416 = vmatprep.subr.mxu0 0.0
    %417 = vmatpush1.msra.mxu0 0.0
    %418 = vmatprep.subr.mxu0 0.0
    %419 = vmatpush1.msra.mxu0 0.0
    %420 = vmatprep.subr.mxu0 0.0
    %421 = vmatpush1.msra.mxu0 0.0
    %422 = vmatprep.subr.mxu0 0.0
    %423 = vmatpush1.msra.mxu0 0.0
    %424 = vmatprep.subr.mxu0 0.0
    %425 = vmatpush1.msra.mxu0 0.0
    %426 = vmatprep.subr.mxu0 0.0
    %427 = vmatpush1.msra.mxu0 0.0
    %428 = vmatprep.subr.mxu0 0.0
    %429 = vmatpush1.msra.mxu0 0.0
    %430 = vmatprep.subr.mxu0 0.0
    %431 = vmatpush1.msra.mxu0 0.0
    %432 = vmatprep.subr.mxu0 0.0
    %433 = vmatpush1.msra.mxu0 0.0
    %434 = vmatprep.subr.mxu0 0.0
    %435 = vmatpush1.msra.mxu0 0.0
    %436 = vmatprep.subr.mxu0 0.0
    %437 = vmatpush1.msra.mxu0 0.0
    %438 = vmatprep.subr.mxu0 0.0
    %439 = vmatpush1.msra.mxu0 0.0
    %440 = vmatprep.subr.mxu0 0.0
    %441 = vmatpush1.msra.mxu0 0.0
    %442 = vmatprep.subr.mxu0 0.0
    %443 = vmatpush1.msra.mxu0 0.0
    %444 = vmatprep.subr.mxu0 0.0
    %445 = vmatpush1.msra.mxu0 0.0
    %446 = vmatprep.subr.mxu0 0.0
    %447 = vmatpush1.msra.mxu0 0.0
    %448 = vmatprep.subr.mxu0 0.0
    %449 = vmatpush1.msra.mxu0 0.0
    %450 = vmatprep.subr.mxu0 0.0
    %451 = vmatpush1.msra.mxu0 0.0
    %452 = vmatprep.mubr.f32.mxu0 0.0
    %v453 = vand.u32 %v132, 4294901760
    %v454 = vsub.f32 %v132, %v453
    %v455 = vand.u32 %v454, 4294901760
    %456 = vmatmul.mubr.f32.gmra.mrb[0].mxu0 %v455
    %v457 = vpop.f32.mrb[0].mxu0
    %v458 = vadd.f32 %v381, %v457
    %v459 = vpop.f32.mrb[0].mxu0
    %460 = vdwg.mxu0
    %461 = vmatprep.subr.mxu0 0.0
    %v462 = vand.u32 %v126, 4294901760
    %v463 = vsub.f32 %v126, %v462
    %v464 = vand.u32 %v463, 4294901760
    %465 = vmatpush1.msra.mxu0 %v464
    %466 = vmatprep.subr.mxu0 0.0
    %v467 = vand.u32 %v127, 4294901760
    %v468 = vsub.f32 %v127, %v467
    %v469 = vand.u32 %v468, 4294901760
    %470 = vmatpush1.msra.mxu0 %v469
    %471 = vmatprep.subr.mxu0 0.0
    %v472 = vand.u32 %v128, 4294901760
    %v473 = vsub.f32 %v128, %v472
    %v474 = vand.u32 %v473, 4294901760
    %475 = vmatpush1.msra.mxu0 %v474
    %476 = vmatprep.subr.mxu0 0.0
    %v477 = vand.u32 %v129, 4294901760
    %v478 = vsub.f32 %v129, %v477
    %v479 = vand.u32 %v478, 4294901760
    %480 = vmatpush1.msra.mxu0 %v479
    %481 = vmatprep.subr.mxu0 0.0
    %482 = vmatpush1.msra.mxu0 0.0
    %483 = vmatprep.subr.mxu0 0.0
    %484 = vmatpush1.msra.mxu0 0.0
    %485 = vmatprep.subr.mxu0 0.0
    %486 = vmatpush1.msra.mxu0 0.0
    %487 = vmatprep.subr.mxu0 0.0
    %488 = vmatpush1.msra.mxu0 0.0
    %489 = vmatprep.subr.mxu0 0.0
    %490 = vmatpush1.msra.mxu0 0.0
    %491 = vmatprep.subr.mxu0 0.0
    %492 = vmatpush1.msra.mxu0 0.0
    %493 = vmatprep.subr.mxu0 0.0
    %494 = vmatpush1.msra.mxu0 0.0
    %495 = vmatprep.subr.mxu0 0.0
    %496 = vmatpush1.msra.mxu0 0.0
    %497 = vmatprep.subr.mxu0 0.0
    %498 = vmatpush1.msra.mxu0 0.0
    %499 = vmatprep.subr.mxu0 0.0
    %500 = vmatpush1.msra.mxu0 0.0
    %501 = vmatprep.subr.mxu0 0.0
    %502 = vmatpush1.msra.mxu0 0.0
    %503 = vmatprep.subr.mxu0 0.0
    %504 = vmatpush1.msra.mxu0 0.0
    %505 = vmatprep.subr.mxu0 0.0
    %506 = vmatpush1.msra.mxu0 0.0
    %507 = vmatprep.subr.mxu0 0.0
    %508 = vmatpush1.msra.mxu0 0.0
    %509 = vmatprep.subr.mxu0 0.0
    %510 = vmatpush1.msra.mxu0 0.0
    %511 = vmatprep.subr.mxu0 0.0
    %512 = vmatpush1.msra.mxu0 0.0
    %513 = vmatprep.subr.mxu0 0.0
    %514 = vmatpush1.msra.mxu0 0.0
    %515 = vmatprep.subr.mxu0 0.0
    %516 = vmatpush1.msra.mxu0 0.0
    %517 = vmatprep.subr.mxu0 0.0
    %518 = vmatpush1.msra.mxu0 0.0
    %519 = vmatprep.subr.mxu0 0.0
    %520 = vmatpush1.msra.mxu0 0.0
    %521 = vmatprep.subr.mxu0 0.0
    %522 = vmatpush1.msra.mxu0 0.0
    %523 = vmatprep.subr.mxu0 0.0
    %524 = vmatpush1.msra.mxu0 0.0
    %525 = vmatprep.subr.mxu0 0.0
    %526 = vmatpush1.msra.mxu0 0.0
    %527 = vmatprep.subr.mxu0 0.0
    %528 = vmatpush1.msra.mxu0 0.0
    %529 = vmatprep.subr.mxu0 0.0
    %530 = vmatpush1.msra.mxu0 0.0
    %531 = vmatprep.subr.mxu0 0.0
    %532 = vmatpush1.msra.mxu0 0.0
    %533 = vmatprep.subr.mxu0 0.0
    %534 = vmatpush1.msra.mxu0 0.0
    %535 = vmatprep.subr.mxu0 0.0
    %536 = vmatpush1.msra.mxu0 0.0
    %537 = vmatprep.mubr.f32.mxu0 0.0
    %v538 = vand.u32 %v132, 4294901760
    %539 = vmatmul.mubr.f32.gmra.mrb[0].mxu0 %v538
    %v540 = vpop.f32.mrb[0].mxu0
    %v541 = vadd.f32 %v458, %v540
    %v542 = vpop.f32.mrb[0].mxu0
    %543 = vdwg.mxu0
    %544 = vmatprep.subr.mxu0 0.0
    %v545 = vand.u32 %v126, 4294901760
    %546 = vmatpush1.msra.mxu0 %v545
    %547 = vmatprep.subr.mxu0 0.0
    %v548 = vand.u32 %v127, 4294901760
    %549 = vmatpush1.msra.mxu0 %v548
    %550 = vmatprep.subr.mxu0 0.0
    %v551 = vand.u32 %v128, 4294901760
    %552 = vmatpush1.msra.mxu0 %v551
    %553 = vmatprep.subr.mxu0 0.0
    %v554 = vand.u32 %v129, 4294901760
    %555 = vmatpush1.msra.mxu0 %v554
    %556 = vmatprep.subr.mxu0 0.0
    %557 = vmatpush1.msra.mxu0 0.0
    %558 = vmatprep.subr.mxu0 0.0
    %559 = vmatpush1.msra.mxu0 0.0
    %560 = vmatprep.subr.mxu0 0.0
    %561 = vmatpush1.msra.mxu0 0.0
    %562 = vmatprep.subr.mxu0 0.0
    %563 = vmatpush1.msra.mxu0 0.0
    %564 = vmatprep.subr.mxu0 0.0
    %565 = vmatpush1.msra.mxu0 0.0
    %566 = vmatprep.subr.mxu0 0.0
    %567 = vmatpush1.msra.mxu0 0.0
    %568 = vmatprep.subr.mxu0 0.0
    %569 = vmatpush1.msra.mxu0 0.0
    %570 = vmatprep.subr.mxu0 0.0
    %571 = vmatpush1.msra.mxu0 0.0
    %572 = vmatprep.subr.mxu0 0.0
    %573 = vmatpush1.msra.mxu0 0.0
    %574 = vmatprep.subr.mxu0 0.0
    %575 = vmatpush1.msra.mxu0 0.0
    %576 = vmatprep.subr.mxu0 0.0
    %577 = vmatpush1.msra.mxu0 0.0
    %578 = vmatprep.subr.mxu0 0.0
    %579 = vmatpush1.msra.mxu0 0.0
    %580 = vmatprep.subr.mxu0 0.0
    %581 = vmatpush1.msra.mxu0 0.0
    %582 = vmatprep.subr.mxu0 0.0
    %583 = vmatpush1.msra.mxu0 0.0
    %584 = vmatprep.subr.mxu0 0.0
    %585 = vmatpush1.msra.mxu0 0.0
    %586 = vmatprep.subr.mxu0 0.0
    %587 = vmatpush1.msra.mxu0 0.0
    %588 = vmatprep.subr.mxu0 0.0
    %589 = vmatpush1.msra.mxu0 0.0
    %590 = vmatprep.subr.mxu0 0.0
    %591 = vmatpush1.msra.mxu0 0.0
    %592 = vmatprep.subr.mxu0 0.0
    %593 = vmatpush1.msra.mxu0 0.0
    %594 = vmatprep.subr.mxu0 0.0
    %595 = vmatpush1.msra.mxu0 0.0
    %596 = vmatprep.subr.mxu0 0.0
    %597 = vmatpush1.msra.mxu0 0.0
    %598 = vmatprep.subr.mxu0 0.0
    %599 = vmatpush1.msra.mxu0 0.0
    %600 = vmatprep.subr.mxu0 0.0
    %601 = vmatpush1.msra.mxu0 0.0
    %602 = vmatprep.subr.mxu0 0.0
    %603 = vmatpush1.msra.mxu0 0.0
    %604 = vmatprep.subr.mxu0 0.0
    %605 = vmatpush1.msra.mxu0 0.0
    %606 = vmatprep.subr.mxu0 0.0
    %607 = vmatpush1.msra.mxu0 0.0
    %608 = vmatprep.subr.mxu0 0.0
    %609 = vmatpush1.msra.mxu0 0.0
    %610 = vmatprep.subr.mxu0 0.0
    %611 = vmatpush1.msra.mxu0 0.0
    %612 = vmatprep.mubr.f32.mxu0 0.0
    %v613 = vand.u32 %v132, 4294901760
    %614 = vmatmul.mubr.f32.gmra.mrb[0].mxu0 %v613
    %v615 = vpop.f32.mrb[0].mxu0
    %v616 = vadd.f32 %v541, %v615
    %v617 = vpop.f32.mrb[0].mxu0
    %618 = vdwg.mxu0
    %v620 = vsel %vm130, %v111, 0
    %622 = vmatprep.subr.mxu0 0.0
    %v623 = vand.u32 %v122, 4294901760
    %624 = vmatpush1.msra.mxu0 %v623
    %625 = vmatprep.subr.mxu0 0.0
    %v626 = vand.u32 %v123, 4294901760
    %627 = vmatpush1.msra.mxu0 %v626
    %628 = vmatprep.subr.mxu0 0.0
    %v629 = vand.u32 %v124, 4294901760
    %630 = vmatpush1.msra.mxu0 %v629
    %631 = vmatprep.subr.mxu0 0.0
    %v632 = vand.u32 %v125, 4294901760
    %633 = vmatpush1.msra.mxu0 %v632
    %634 = vmatprep.subr.mxu0 0.0
    %635 = vmatpush1.msra.mxu0 0.0
    %636 = vmatprep.subr.mxu0 0.0
    %637 = vmatpush1.msra.mxu0 0.0
    %638 = vmatprep.subr.mxu0 0.0
    %639 = vmatpush1.msra.mxu0 0.0
    %640 = vmatprep.subr.mxu0 0.0
    %641 = vmatpush1.msra.mxu0 0.0
    %642 = vmatprep.subr.mxu0 0.0
    %643 = vmatpush1.msra.mxu0 0.0
    %644 = vmatprep.subr.mxu0 0.0
    %645 = vmatpush1.msra.mxu0 0.0
    %646 = vmatprep.subr.mxu0 0.0
    %647 = vmatpush1.msra.mxu0 0.0
    %648 = vmatprep.subr.mxu0 0.0
    %649 = vmatpush1.msra.mxu0 0.0
    %650 = vmatprep.subr.mxu0 0.0
    %651 = vmatpush1.msra.mxu0 0.0
    %652 = vmatprep.subr.mxu0 0.0
    %653 = vmatpush1.msra.mxu0 0.0
    %654 = vmatprep.subr.mxu0 0.0
    %655 = vmatpush1.msra.mxu0 0.0
    %656 = vmatprep.subr.mxu0 0.0
    %657 = vmatpush1.msra.mxu0 0.0
    %658 = vmatprep.subr.mxu0 0.0
    %659 = vmatpush1.msra.mxu0 0.0
    %660 = vmatprep.subr.mxu0 0.0
    %661 = vmatpush1.msra.mxu0 0.0
    %662 = vmatprep.subr.mxu0 0.0
    %663 = vmatpush1.msra.mxu0 0.0
    %664 = vmatprep.subr.mxu0 0.0
    %665 = vmatpush1.msra.mxu0 0.0
    %666 = vmatprep.subr.mxu0 0.0
    %667 = vmatpush1.msra.mxu0 0.0
    %668 = vmatprep.subr.mxu0 0.0
    %669 = vmatpush1.msra.mxu0 0.0
    %670 = vmatprep.subr.mxu0 0.0
    %671 = vmatpush1.msra.mxu0 0.0
    %672 = vmatprep.subr.mxu0 0.0
    %673 = vmatpush1.msra.mxu0 0.0
    %674 = vmatprep.subr.mxu0 0.0
    %675 = vmatpush1.msra.mxu0 0.0
    %676 = vmatprep.subr.mxu0 0.0
    %677 = vmatpush1.msra.mxu0 0.0
    %678 = vmatprep.subr.mxu0 0.0
    %679 = vmatpush1.msra.mxu0 0.0
    %680 = vmatprep.subr.mxu0 0.0
    %681 = vmatpush1.msra.mxu0 0.0
    %682 = vmatprep.subr.mxu0 0.0
    %683 = vmatpush1.msra.mxu0 0.0
    %684 = vmatprep.subr.mxu0 0.0
    %685 = vmatpush1.msra.mxu0 0.0
    %686 = vmatprep.subr.mxu0 0.0
    %687 = vmatpush1.msra.mxu0 0.0
    %688 = vmatprep.subr.mxu0 0.0
    %689 = vmatpush1.msra.mxu0 0.0
    %690 = vmatprep.mubr.f32.mxu0 0.0
    %v691 = vand.u32 %v620, 4294901760
    %v692 = vsub.f32 %v620, %v691
    %v693 = vand.u32 %v692, 4294901760
    %v694 = vsub.f32 %v692, %v693
    %v695 = vand.u32 %v694, 4294901760
    %696 = vmatmul.mubr.f32.gmra.mrb[0].mxu0 %v695
    %v697 = vpop.f32.mrb[0].mxu0
    %v698 = vadd.f32 %v616, %v697
    %v699 = vpop.f32.mrb[0].mxu0
    %700 = vdwg.mxu0
    %701 = vmatprep.subr.mxu0 0.0
    %v702 = vand.u32 %v122, 4294901760
    %v703 = vsub.f32 %v122, %v702
    %v704 = vand.u32 %v703, 4294901760
    %v705 = vsub.f32 %v703, %v704
    %v706 = vand.u32 %v705, 4294901760
    %707 = vmatpush1.msra.mxu0 %v706
    %708 = vmatprep.subr.mxu0 0.0
    %v709 = vand.u32 %v123, 4294901760
    %v710 = vsub.f32 %v123, %v709
    %v711 = vand.u32 %v710, 4294901760
    %v712 = vsub.f32 %v710, %v711
    %v713 = vand.u32 %v712, 4294901760
    %714 = vmatpush1.msra.mxu0 %v713
    %715 = vmatprep.subr.mxu0 0.0
    %v716 = vand.u32 %v124, 4294901760
    %v717 = vsub.f32 %v124, %v716
    %v718 = vand.u32 %v717, 4294901760
    %v719 = vsub.f32 %v717, %v718
    %v720 = vand.u32 %v719, 4294901760
    %721 = vmatpush1.msra.mxu0 %v720
    %722 = vmatprep.subr.mxu0 0.0
    %v723 = vand.u32 %v125, 4294901760
    %v724 = vsub.f32 %v125, %v723
    %v725 = vand.u32 %v724, 4294901760
    %v726 = vsub.f32 %v724, %v725
    %v727 = vand.u32 %v726, 4294901760
    %728 = vmatpush1.msra.mxu0 %v727
    %729 = vmatprep.subr.mxu0 0.0
    %730 = vmatpush1.msra.mxu0 0.0
    %731 = vmatprep.subr.mxu0 0.0
    %732 = vmatpush1.msra.mxu0 0.0
    %733 = vmatprep.subr.mxu0 0.0
    %734 = vmatpush1.msra.mxu0 0.0
    %735 = vmatprep.subr.mxu0 0.0
    %736 = vmatpush1.msra.mxu0 0.0
    %737 = vmatprep.subr.mxu0 0.0
    %738 = vmatpush1.msra.mxu0 0.0
    %739 = vmatprep.subr.mxu0 0.0
    %740 = vmatpush1.msra.mxu0 0.0
    %741 = vmatprep.subr.mxu0 0.0
    %742 = vmatpush1.msra.mxu0 0.0
    %743 = vmatprep.subr.mxu0 0.0
    %744 = vmatpush1.msra.mxu0 0.0
    %745 = vmatprep.subr.mxu0 0.0
    %746 = vmatpush1.msra.mxu0 0.0
    %747 = vmatprep.subr.mxu0 0.0
    %748 = vmatpush1.msra.mxu0 0.0
    %749 = vmatprep.subr.mxu0 0.0
    %750 = vmatpush1.msra.mxu0 0.0
    %751 = vmatprep.subr.mxu0 0.0
    %752 = vmatpush1.msra.mxu0 0.0
    %753 = vmatprep.subr.mxu0 0.0
    %754 = vmatpush1.msra.mxu0 0.0
    %755 = vmatprep.subr.mxu0 0.0
    %756 = vmatpush1.msra.mxu0 0.0
    %757 = vmatprep.subr.mxu0 0.0
    %758 = vmatpush1.msra.mxu0 0.0
    %759 = vmatprep.subr.mxu0 0.0
    %760 = vmatpush1.msra.mxu0 0.0
    %761 = vmatprep.subr.mxu0 0.0
    %762 = vmatpush1.msra.mxu0 0.0
    %763 = vmatprep.subr.mxu0 0.0
    %764 = vmatpush1.msra.mxu0 0.0
    %765 = vmatprep.subr.mxu0 0.0
    %766 = vmatpush1.msra.mxu0 0.0
    %767 = vmatprep.subr.mxu0 0.0
    %768 = vmatpush1.msra.mxu0 0.0
    %769 = vmatprep.subr.mxu0 0.0
    %770 = vmatpush1.msra.mxu0 0.0
    %771 = vmatprep.subr.mxu0 0.0
    %772 = vmatpush1.msra.mxu0 0.0
    %773 = vmatprep.subr.mxu0 0.0
    %774 = vmatpush1.msra.mxu0 0.0
    %775 = vmatprep.subr.mxu0 0.0
    %776 = vmatpush1.msra.mxu0 0.0
    %777 = vmatprep.subr.mxu0 0.0
    %778 = vmatpush1.msra.mxu0 0.0
    %779 = vmatprep.subr.mxu0 0.0
    %780 = vmatpush1.msra.mxu0 0.0
    %781 = vmatprep.subr.mxu0 0.0
    %782 = vmatpush1.msra.mxu0 0.0
    %783 = vmatprep.subr.mxu0 0.0
    %784 = vmatpush1.msra.mxu0 0.0
    %785 = vmatprep.mubr.f32.mxu0 0.0
    %v786 = vand.u32 %v620, 4294901760
    %787 = vmatmul.mubr.f32.gmra.mrb[0].mxu0 %v786
    %v788 = vpop.f32.mrb[0].mxu0
    %v789 = vadd.f32 %v698, %v788
    %v790 = vpop.f32.mrb[0].mxu0
    %791 = vdwg.mxu0
    %792 = vmatprep.subr.mxu0 0.0
    %v793 = vand.u32 %v122, 4294901760
    %v794 = vsub.f32 %v122, %v793
    %795 = vmatpush1.msra.mxu0 %v794
    %796 = vmatprep.subr.mxu0 0.0
    %v797 = vand.u32 %v123, 4294901760
    %v798 = vsub.f32 %v123, %v797
    %799 = vmatpush1.msra.mxu0 %v798
    %800 = vmatprep.subr.mxu0 0.0
    %v801 = vand.u32 %v124, 4294901760
    %v802 = vsub.f32 %v124, %v801
    %803 = vmatpush1.msra.mxu0 %v802
    %804 = vmatprep.subr.mxu0 0.0
    %v805 = vand.u32 %v125, 4294901760
    %v806 = vsub.f32 %v125, %v805
    %807 = vmatpush1.msra.mxu0 %v806
    %808 = vmatprep.subr.mxu0 0.0
    %809 = vmatpush1.msra.mxu0 0.0
    %810 = vmatprep.subr.mxu0 0.0
    %811 = vmatpush1.msra.mxu0 0.0
    %812 = vmatprep.subr.mxu0 0.0
    %813 = vmatpush1.msra.mxu0 0.0
    %814 = vmatprep.subr.mxu0 0.0
    %815 = vmatpush1.msra.mxu0 0.0
    %816 = vmatprep.subr.mxu0 0.0
    %817 = vmatpush1.msra.mxu0 0.0
    %818 = vmatprep.subr.mxu0 0.0
    %819 = vmatpush1.msra.mxu0 0.0
    %820 = vmatprep.subr.mxu0 0.0
    %821 = vmatpush1.msra.mxu0 0.0
    %822 = vmatprep.subr.mxu0 0.0
    %823 = vmatpush1.msra.mxu0 0.0
    %824 = vmatprep.subr.mxu0 0.0
    %825 = vmatpush1.msra.mxu0 0.0
    %826 = vmatprep.subr.mxu0 0.0
    %827 = vmatpush1.msra.mxu0 0.0
    %828 = vmatprep.subr.mxu0 0.0
    %829 = vmatpush1.msra.mxu0 0.0
    %830 = vmatprep.subr.mxu0 0.0
    %831 = vmatpush1.msra.mxu0 0.0
    %832 = vmatprep.subr.mxu0 0.0
    %833 = vmatpush1.msra.mxu0 0.0
    %834 = vmatprep.subr.mxu0 0.0
    %835 = vmatpush1.msra.mxu0 0.0
    %836 = vmatprep.subr.mxu0 0.0
    %837 = vmatpush1.msra.mxu0 0.0
    %838 = vmatprep.subr.mxu0 0.0
    %839 = vmatpush1.msra.mxu0 0.0
    %840 = vmatprep.subr.mxu0 0.0
    %841 = vmatpush1.msra.mxu0 0.0
    %842 = vmatprep.subr.mxu0 0.0
    %843 = vmatpush1.msra.mxu0 0.0
    %844 = vmatprep.subr.mxu0 0.0
    %845 = vmatpush1.msra.mxu0 0.0
    %846 = vmatprep.subr.mxu0 0.0
    %847 = vmatpush1.msra.mxu0 0.0
    %848 = vmatprep.subr.mxu0 0.0
    %849 = vmatpush1.msra.mxu0 0.0
    %850 = vmatprep.subr.mxu0 0.0
    %851 = vmatpush1.msra.mxu0 0.0
    %852 = vmatprep.subr.mxu0 0.0
    %853 = vmatpush1.msra.mxu0 0.0
    %854 = vmatprep.subr.mxu0 0.0
    %855 = vmatpush1.msra.mxu0 0.0
    %856 = vmatprep.subr.mxu0 0.0
    %857 = vmatpush1.msra.mxu0 0.0
    %858 = vmatprep.subr.mxu0 0.0
    %859 = vmatpush1.msra.mxu0 0.0
    %860 = vmatprep.subr.mxu0 0.0
    %861 = vmatpush1.msra.mxu0 0.0
    %862 = vmatprep.subr.mxu0 0.0
    %863 = vmatpush1.msra.mxu0 0.0
    %864 = vmatprep.mubr.f32.mxu0 0.0
    %v865 = vand.u32 %v620, 4294901760
    %v866 = vsub.f32 %v620, %v865
    %867 = vmatmul.mubr.f32.gmra.mrb[0].mxu0 %v866
    %v868 = vpop.f32.mrb[0].mxu0
    %v869 = vadd.f32 %v789, %v868
    %v870 = vpop.f32.mrb[0].mxu0
    %871 = vdwg.mxu0
    %872 = vmatprep.subr.mxu0 0.0
    %v873 = vand.u32 %v122, 4294901760
    %874 = vmatpush1.msra.mxu0 %v873
    %875 = vmatprep.subr.mxu0 0.0
    %v876 = vand.u32 %v123, 4294901760
    %877 = vmatpush1.msra.mxu0 %v876
    %878 = vmatprep.subr.mxu0 0.0
    %v879 = vand.u32 %v124, 4294901760
    %880 = vmatpush1.msra.mxu0 %v879
    %881 = vmatprep.subr.mxu0 0.0
    %v882 = vand.u32 %v125, 4294901760
    %883 = vmatpush1.msra.mxu0 %v882
    %884 = vmatprep.subr.mxu0 0.0
    %885 = vmatpush1.msra.mxu0 0.0
    %886 = vmatprep.subr.mxu0 0.0
    %887 = vmatpush1.msra.mxu0 0.0
    %888 = vmatprep.subr.mxu0 0.0
    %889 = vmatpush1.msra.mxu0 0.0
    %890 = vmatprep.subr.mxu0 0.0
    %891 = vmatpush1.msra.mxu0 0.0
    %892 = vmatprep.subr.mxu0 0.0
    %893 = vmatpush1.msra.mxu0 0.0
    %894 = vmatprep.subr.mxu0 0.0
    %895 = vmatpush1.msra.mxu0 0.0
    %896 = vmatprep.subr.mxu0 0.0
    %897 = vmatpush1.msra.mxu0 0.0
    %898 = vmatprep.subr.mxu0 0.0
    %899 = vmatpush1.msra.mxu0 0.0
    %900 = vmatprep.subr.mxu0 0.0
    %901 = vmatpush1.msra.mxu0 0.0
    %902 = vmatprep.subr.mxu0 0.0
    %903 = vmatpush1.msra.mxu0 0.0
    %904 = vmatprep.subr.mxu0 0.0
    %905 = vmatpush1.msra.mxu0 0.0
    %906 = vmatprep.subr.mxu0 0.0
    %907 = vmatpush1.msra.mxu0 0.0
    %908 = vmatprep.subr.mxu0 0.0
    %909 = vmatpush1.msra.mxu0 0.0
    %910 = vmatprep.subr.mxu0 0.0
    %911 = vmatpush1.msra.mxu0 0.0
    %912 = vmatprep.subr.mxu0 0.0
    %913 = vmatpush1.msra.mxu0 0.0
    %914 = vmatprep.subr.mxu0 0.0
    %915 = vmatpush1.msra.mxu0 0.0
    %916 = vmatprep.subr.mxu0 0.0
    %917 = vmatpush1.msra.mxu0 0.0
    %918 = vmatprep.subr.mxu0 0.0
    %919 = vmatpush1.msra.mxu0 0.0
    %920 = vmatprep.subr.mxu0 0.0
    %921 = vmatpush1.msra.mxu0 0.0
    %922 = vmatprep.subr.mxu0 0.0
    %923 = vmatpush1.msra.mxu0 0.0
    %924 = vmatprep.subr.mxu0 0.0
    %925 = vmatpush1.msra.mxu0 0.0
    %926 = vmatprep.subr.mxu0 0.0
    %927 = vmatpush1.msra.mxu0 0.0
    %928 = vmatprep.subr.mxu0 0.0
    %929 = vmatpush1.msra.mxu0 0.0
    %930 = vmatprep.subr.mxu0 0.0
    %931 = vmatpush1.msra.mxu0 0.0
    %932 = vmatprep.subr.mxu0 0.0
    %933 = vmatpush1.msra.mxu0 0.0
    %934 = vmatprep.subr.mxu0 0.0
    %935 = vmatpush1.msra.mxu0 0.0
    %936 = vmatprep.subr.mxu0 0.0
    %937 = vmatpush1.msra.mxu0 0.0
    %938 = vmatprep.subr.mxu0 0.0
    %939 = vmatpush1.msra.mxu0 0.0
    %940 = vmatprep.mubr.f32.mxu0 0.0
    %v941 = vand.u32 %v620, 4294901760
    %v942 = vsub.f32 %v620, %v941
    %v943 = vand.u32 %v942, 4294901760
    %944 = vmatmul.mubr.f32.gmra.mrb[0].mxu0 %v943
    %v945 = vpop.f32.mrb[0].mxu0
    %v946 = vadd.f32 %v869, %v945
    %v947 = vpop.f32.mrb[0].mxu0
    %948 = vdwg.mxu0
    %949 = vmatprep.subr.mxu0 0.0
    %v950 = vand.u32 %v122, 4294901760
    %v951 = vsub.f32 %v122, %v950
    %v952 = vand.u32 %v951, 4294901760
    %953 = vmatpush1.msra.mxu0 %v952
    %954 = vmatprep.subr.mxu0 0.0
    %v955 = vand.u32 %v123, 4294901760
    %v956 = vsub.f32 %v123, %v955
    %v957 = vand.u32 %v956, 4294901760
    %958 = vmatpush1.msra.mxu0 %v957
    %959 = vmatprep.subr.mxu0 0.0
    %v960 = vand.u32 %v124, 4294901760
    %v961 = vsub.f32 %v124, %v960
    %v962 = vand.u32 %v961, 4294901760
    %963 = vmatpush1.msra.mxu0 %v962
    %964 = vmatprep.subr.mxu0 0.0
    %v965 = vand.u32 %v125, 4294901760
    %v966 = vsub.f32 %v125, %v965
    %v967 = vand.u32 %v966, 4294901760
    %968 = vmatpush1.msra.mxu0 %v967
    %969 = vmatprep.subr.mxu0 0.0
    %970 = vmatpush1.msra.mxu0 0.0
    %971 = vmatprep.subr.mxu0 0.0
    %972 = vmatpush1.msra.mxu0 0.0
    %973 = vmatprep.subr.mxu0 0.0
    %974 = vmatpush1.msra.mxu0 0.0
    %975 = vmatprep.subr.mxu0 0.0
    %976 = vmatpush1.msra.mxu0 0.0
    %977 = vmatprep.subr.mxu0 0.0
    %978 = vmatpush1.msra.mxu0 0.0
    %979 = vmatprep.subr.mxu0 0.0
    %980 = vmatpush1.msra.mxu0 0.0
    %981 = vmatprep.subr.mxu0 0.0
    %982 = vmatpush1.msra.mxu0 0.0
    %983 = vmatprep.subr.mxu0 0.0
    %984 = vmatpush1.msra.mxu0 0.0
    %985 = vmatprep.subr.mxu0 0.0
    %986 = vmatpush1.msra.mxu0 0.0
    %987 = vmatprep.subr.mxu0 0.0
    %988 = vmatpush1.msra.mxu0 0.0
    %989 = vmatprep.subr.mxu0 0.0
    %990 = vmatpush1.msra.mxu0 0.0
    %991 = vmatprep.subr.mxu0 0.0
    %992 = vmatpush1.msra.mxu0 0.0
    %993 = vmatprep.subr.mxu0 0.0
    %994 = vmatpush1.msra.mxu0 0.0
    %995 = vmatprep.subr.mxu0 0.0
    %996 = vmatpush1.msra.mxu0 0.0
    %997 = vmatprep.subr.mxu0 0.0
    %998 = vmatpush1.msra.mxu0 0.0
    %999 = vmatprep.subr.mxu0 0.0
    %1000 = vmatpush1.msra.mxu0 0.0
    %1001 = vmatprep.subr.mxu0 0.0
    %1002 = vmatpush1.msra.mxu0 0.0
    %1003 = vmatprep.subr.mxu0 0.0
    %1004 = vmatpush1.msra.mxu0 0.0
    %1005 = vmatprep.subr.mxu0 0.0
    %1006 = vmatpush1.msra.mxu0 0.0
    %1007 = vmatprep.subr.mxu0 0.0
    %1008 = vmatpush1.msra.mxu0 0.0
    %1009 = vmatprep.subr.mxu0 0.0
    %1010 = vmatpush1.msra.mxu0 0.0
    %1011 = vmatprep.subr.mxu0 0.0
    %1012 = vmatpush1.msra.mxu0 0.0
    %1013 = vmatprep.subr.mxu0 0.0
    %1014 = vmatpush1.msra.mxu0 0.0
    %1015 = vmatprep.subr.mxu0 0.0
    %1016 = vmatpush1.msra.mxu0 0.0
    %1017 = vmatprep.subr.mxu0 0.0
    %1018 = vmatpush1.msra.mxu0 0.0
    %1019 = vmatprep.subr.mxu0 0.0
    %1020 = vmatpush1.msra.mxu0 0.0
    %1021 = vmatprep.subr.mxu0 0.0
    %1022 = vmatpush1.msra.mxu0 0.0
    %1023 = vmatprep.subr.mxu0 0.0
    %1024 = vmatpush1.msra.mxu0 0.0
    %1025 = vmatprep.mubr.f32.mxu0 0.0
    %v1026 = vand.u32 %v620, 4294901760
    %1027 = vmatmul.mubr.f32.gmra.mrb[0].mxu0 %v1026
    %v1028 = vpop.f32.mrb[0].mxu0
    %v1029 = vadd.f32 %v946, %v1028
    %v1030 = vpop.f32.mrb[0].mxu0
    %1031 = vdwg.mxu0
    %1032 = vmatprep.subr.mxu0 0.0
    %v1033 = vand.u32 %v122, 4294901760
    %1034 = vmatpush1.msra.mxu0 %v1033
    %1035 = vmatprep.subr.mxu0 0.0
    %v1036 = vand.u32 %v123, 4294901760
    %1037 = vmatpush1.msra.mxu0 %v1036
    %1038 = vmatprep.subr.mxu0 0.0
    %v1039 = vand.u32 %v124, 4294901760
    %1040 = vmatpush1.msra.mxu0 %v1039
    %1041 = vmatprep.subr.mxu0 0.0
    %v1042 = vand.u32 %v125, 4294901760
    %1043 = vmatpush1.msra.mxu0 %v1042
    %1044 = vmatprep.subr.mxu0 0.0
    %1045 = vmatpush1.msra.mxu0 0.0
    %1046 = vmatprep.subr.mxu0 0.0
    %1047 = vmatpush1.msra.mxu0 0.0
    %1048 = vmatprep.subr.mxu0 0.0
    %1049 = vmatpush1.msra.mxu0 0.0
    %1050 = vmatprep.subr.mxu0 0.0
    %1051 = vmatpush1.msra.mxu0 0.0
    %1052 = vmatprep.subr.mxu0 0.0
    %1053 = vmatpush1.msra.mxu0 0.0
    %1054 = vmatprep.subr.mxu0 0.0
    %1055 = vmatpush1.msra.mxu0 0.0
    %1056 = vmatprep.subr.mxu0 0.0
    %1057 = vmatpush1.msra.mxu0 0.0
    %1058 = vmatprep.subr.mxu0 0.0
    %1059 = vmatpush1.msra.mxu0 0.0
    %1060 = vmatprep.subr.mxu0 0.0
    %1061 = vmatpush1.msra.mxu0 0.0
    %1062 = vmatprep.subr.mxu0 0.0
    %1063 = vmatpush1.msra.mxu0 0.0
    %1064 = vmatprep.subr.mxu0 0.0
    %1065 = vmatpush1.msra.mxu0 0.0
    %1066 = vmatprep.subr.mxu0 0.0
    %1067 = vmatpush1.msra.mxu0 0.0
    %1068 = vmatprep.subr.mxu0 0.0
    %1069 = vmatpush1.msra.mxu0 0.0
    %1070 = vmatprep.subr.mxu0 0.0
    %1071 = vmatpush1.msra.mxu0 0.0
    %1072 = vmatprep.subr.mxu0 0.0
    %1073 = vmatpush1.msra.mxu0 0.0
    %1074 = vmatprep.subr.mxu0 0.0
    %1075 = vmatpush1.msra.mxu0 0.0
    %1076 = vmatprep.subr.mxu0 0.0
    %1077 = vmatpush1.msra.mxu0 0.0
    %1078 = vmatprep.subr.mxu0 0.0
    %1079 = vmatpush1.msra.mxu0 0.0
    %1080 = vmatprep.subr.mxu0 0.0
    %1081 = vmatpush1.msra.mxu0 0.0
    %1082 = vmatprep.subr.mxu0 0.0
    %1083 = vmatpush1.msra.mxu0 0.0
    %1084 = vmatprep.subr.mxu0 0.0
    %1085 = vmatpush1.msra.mxu0 0.0
    %1086 = vmatprep.subr.mxu0 0.0
    %1087 = vmatpush1.msra.mxu0 0.0
    %1088 = vmatprep.subr.mxu0 0.0
    %1089 = vmatpush1.msra.mxu0 0.0
    %1090 = vmatprep.subr.mxu0 0.0
    %1091 = vmatpush1.msra.mxu0 0.0
    %1092 = vmatprep.subr.mxu0 0.0
    %1093 = vmatpush1.msra.mxu0 0.0
    %1094 = vmatprep.subr.mxu0 0.0
    %1095 = vmatpush1.msra.mxu0 0.0
    %1096 = vmatprep.subr.mxu0 0.0
    %1097 = vmatpush1.msra.mxu0 0.0
    %1098 = vmatprep.subr.mxu0 0.0
    %1099 = vmatpush1.msra.mxu0 0.0
    %1100 = vmatprep.mubr.f32.mxu0 0.0
    %v1101 = vand.u32 %v620, 4294901760
    %1102 = vmatmul.mubr.f32.gmra.mrb[0].mxu0 %v1101
    %v1103 = vpop.f32.mrb[0].mxu0
    %v1104 = vadd.f32 %v1029, %v1103
    %v1105 = vpop.f32.mrb[0].mxu0
    %1106 = vdwg.mxu0
    %v1107 = vld [vmem:[#allocation7] sm:$0xff]
    %vm1108 = vcmask 64512
    %v1110 = vsel %vm1108, %v121, 0
    %1112 = vmatprep.subr.mxu0 0.0
    %v1113 = vand.u32 %v1107, 4294901760
    %1114 = vmatpush1.msra.mxu0 %v1113
    %1115 = vmatprep.subr.mxu0 0.0
    %1116 = vmatpush1.msra.mxu0 0.0
    %1117 = vmatprep.subr.mxu0 0.0
    %1118 = vmatpush1.msra.mxu0 0.0
    %1119 = vmatprep.subr.mxu0 0.0
    %1120 = vmatpush1.msra.mxu0 0.0
    %1121 = vmatprep.subr.mxu0 0.0
    %1122 = vmatpush1.msra.mxu0 0.0
    %1123 = vmatprep.subr.mxu0 0.0
    %1124 = vmatpush1.msra.mxu0 0.0
    %1125 = vmatprep.subr.mxu0 0.0
    %1126 = vmatpush1.msra.mxu0 0.0
    %1127 = vmatprep.subr.mxu0 0.0
    %1128 = vmatpush1.msra.mxu0 0.0
    %1129 = vmatprep.subr.mxu0 0.0
    %1130 = vmatpush1.msra.mxu0 0.0
    %1131 = vmatprep.subr.mxu0 0.0
    %1132 = vmatpush1.msra.mxu0 0.0
    %1133 = vmatprep.subr.mxu0 0.0
    %1134 = vmatpush1.msra.mxu0 0.0
    %1135 = vmatprep.subr.mxu0 0.0
    %1136 = vmatpush1.msra.mxu0 0.0
    %1137 = vmatprep.subr.mxu0 0.0
    %1138 = vmatpush1.msra.mxu0 0.0
    %1139 = vmatprep.subr.mxu0 0.0
    %1140 = vmatpush1.msra.mxu0 0.0
    %1141 = vmatprep.subr.mxu0 0.0
    %1142 = vmatpush1.msra.mxu0 0.0
    %1143 = vmatprep.subr.mxu0 0.0
    %1144 = vmatpush1.msra.mxu0 0.0
    %1145 = vmatprep.subr.mxu0 0.0
    %1146 = vmatpush1.msra.mxu0 0.0
    %1147 = vmatprep.subr.mxu0 0.0
    %1148 = vmatpush1.msra.mxu0 0.0
    %1149 = vmatprep.subr.mxu0 0.0
    %1150 = vmatpush1.msra.mxu0 0.0
    %1151 = vmatprep.subr.mxu0 0.0
    %1152 = vmatpush1.msra.mxu0 0.0
    %1153 = vmatprep.subr.mxu0 0.0
    %1154 = vmatpush1.msra.mxu0 0.0
    %1155 = vmatprep.subr.mxu0 0.0
    %1156 = vmatpush1.msra.mxu0 0.0
    %1157 = vmatprep.subr.mxu0 0.0
    %1158 = vmatpush1.msra.mxu0 0.0
    %1159 = vmatprep.subr.mxu0 0.0
    %1160 = vmatpush1.msra.mxu0 0.0
    %1161 = vmatprep.subr.mxu0 0.0
    %1162 = vmatpush1.msra.mxu0 0.0
    %1163 = vmatprep.subr.mxu0 0.0
    %1164 = vmatpush1.msra.mxu0 0.0
    %1165 = vmatprep.subr.mxu0 0.0
    %1166 = vmatpush1.msra.mxu0 0.0
    %1167 = vmatprep.subr.mxu0 0.0
    %1168 = vmatpush1.msra.mxu0 0.0
    %1169 = vmatprep.subr.mxu0 0.0
    %1170 = vmatpush1.msra.mxu0 0.0
    %1171 = vmatprep.subr.mxu0 0.0
    %1172 = vmatpush1.msra.mxu0 0.0
    %1173 = vmatprep.subr.mxu0 0.0
    %1174 = vmatpush1.msra.mxu0 0.0
    %1175 = vmatprep.subr.mxu0 0.0
    %1176 = vmatpush1.msra.mxu0 0.0
    %1177 = vmatprep.mubr.f32.mxu0 0.0
    %v1178 = vand.u32 %v1110, 4294901760
    %v1179 = vsub.f32 %v1110, %v1178
    %v1180 = vand.u32 %v1179, 4294901760
    %v1181 = vsub.f32 %v1179, %v1180
    %v1182 = vand.u32 %v1181, 4294901760
    %1183 = vmatmul.mubr.f32.gmra.mrb[0].mxu0 %v1182
    %v1184 = vpop.f32.mrb[0].mxu0
    %v1185 = vadd.f32 0.0, %v1184
    %v1186 = vpop.f32.mrb[0].mxu0
    %1187 = vdwg.mxu0
    %1188 = vmatprep.subr.mxu0 0.0
    %v1189 = vand.u32 %v1107, 4294901760
    %v1190 = vsub.f32 %v1107, %v1189
    %v1191 = vand.u32 %v1190, 4294901760
    %v1192 = vsub.f32 %v1190, %v1191
    %v1193 = vand.u32 %v1192, 4294901760
    %1194 = vmatpush1.msra.mxu0 %v1193
    %1195 = vmatprep.subr.mxu0 0.0
    %1196 = vmatpush1.msra.mxu0 0.0
    %1197 = vmatprep.subr.mxu0 0.0
    %1198 = vmatpush1.msra.mxu0 0.0
    %1199 = vmatprep.subr.mxu0 0.0
    %1200 = vmatpush1.msra.mxu0 0.0
    %1201 = vmatprep.subr.mxu0 0.0
    %1202 = vmatpush1.msra.mxu0 0.0
    %1203 = vmatprep.subr.mxu0 0.0
    %1204 = vmatpush1.msra.mxu0 0.0
    %1205 = vmatprep.subr.mxu0 0.0
    %1206 = vmatpush1.msra.mxu0 0.0
    %1207 = vmatprep.subr.mxu0 0.0
    %1208 = vmatpush1.msra.mxu0 0.0
    %1209 = vmatprep.subr.mxu0 0.0
    %1210 = vmatpush1.msra.mxu0 0.0
    %1211 = vmatprep.subr.mxu0 0.0
    %1212 = vmatpush1.msra.mxu0 0.0
    %1213 = vmatprep.subr.mxu0 0.0
    %1214 = vmatpush1.msra.mxu0 0.0
    %1215 = vmatprep.subr.mxu0 0.0
    %1216 = vmatpush1.msra.mxu0 0.0
    %1217 = vmatprep.subr.mxu0 0.0
    %1218 = vmatpush1.msra.mxu0 0.0
    %1219 = vmatprep.subr.mxu0 0.0
    %1220 = vmatpush1.msra.mxu0 0.0
    %1221 = vmatprep.subr.mxu0 0.0
    %1222 = vmatpush1.msra.mxu0 0.0
    %1223 = vmatprep.subr.mxu0 0.0
    %1224 = vmatpush1.msra.mxu0 0.0
    %1225 = vmatprep.subr.mxu0 0.0
    %1226 = vmatpush1.msra.mxu0 0.0
    %1227 = vmatprep.subr.mxu0 0.0
    %1228 = vmatpush1.msra.mxu0 0.0
    %1229 = vmatprep.subr.mxu0 0.0
    %1230 = vmatpush1.msra.mxu0 0.0
    %1231 = vmatprep.subr.mxu0 0.0
    %1232 = vmatpush1.msra.mxu0 0.0
    %1233 = vmatprep.subr.mxu0 0.0
    %1234 = vmatpush1.msra.mxu0 0.0
    %1235 = vmatprep.subr.mxu0 0.0
    %1236 = vmatpush1.msra.mxu0 0.0
    %1237 = vmatprep.subr.mxu0 0.0
    %1238 = vmatpush1.msra.mxu0 0.0
    %1239 = vmatprep.subr.mxu0 0.0
    %1240 = vmatpush1.msra.mxu0 0.0
    %1241 = vmatprep.subr.mxu0 0.0
    %1242 = vmatpush1.msra.mxu0 0.0
    %1243 = vmatprep.subr.mxu0 0.0
    %1244 = vmatpush1.msra.mxu0 0.0
    %1245 = vmatprep.subr.mxu0 0.0
    %1246 = vmatpush1.msra.mxu0 0.0
    %1247 = vmatprep.subr.mxu0 0.0
    %1248 = vmatpush1.msra.mxu0 0.0
    %1249 = vmatprep.subr.mxu0 0.0
    %1250 = vmatpush1.msra.mxu0 0.0
    %1251 = vmatprep.subr.mxu0 0.0
    %1252 = vmatpush1.msra.mxu0 0.0
    %1253 = vmatprep.subr.mxu0 0.0
    %1254 = vmatpush1.msra.mxu0 0.0
    %1255 = vmatprep.subr.mxu0 0.0
    %1256 = vmatpush1.msra.mxu0 0.0
    %1257 = vmatprep.mubr.f32.mxu0 0.0
    %v1258 = vand.u32 %v1110, 4294901760
    %1259 = vmatmul.mubr.f32.gmra.mrb[0].mxu0 %v1258
    %v1260 = vpop.f32.mrb[0].mxu0
    %v1261 = vadd.f32 %v1185, %v1260
    %v1262 = vpop.f32.mrb[0].mxu0
    %1263 = vdwg.mxu0
    %1264 = vmatprep.subr.mxu0 0.0
    %v1265 = vand.u32 %v1107, 4294901760
    %v1266 = vsub.f32 %v1107, %v1265
    %1267 = vmatpush1.msra.mxu0 %v1266
    %1268 = vmatprep.subr.mxu0 0.0
    %1269 = vmatpush1.msra.mxu0 0.0
    %1270 = vmatprep.subr.mxu0 0.0
    %1271 = vmatpush1.msra.mxu0 0.0
    %1272 = vmatprep.subr.mxu0 0.0
    %1273 = vmatpush1.msra.mxu0 0.0
    %1274 = vmatprep.subr.mxu0 0.0
    %1275 = vmatpush1.msra.mxu0 0.0
    %1276 = vmatprep.subr.mxu0 0.0
    %1277 = vmatpush1.msra.mxu0 0.0
    %1278 = vmatprep.subr.mxu0 0.0
    %1279 = vmatpush1.msra.mxu0 0.0
    %1280 = vmatprep.subr.mxu0 0.0
    %1281 = vmatpush1.msra.mxu0 0.0
    %1282 = vmatprep.subr.mxu0 0.0
    %1283 = vmatpush1.msra.mxu0 0.0
    %1284 = vmatprep.subr.mxu0 0.0
    %1285 = vmatpush1.msra.mxu0 0.0
    %1286 = vmatprep.subr.mxu0 0.0
    %1287 = vmatpush1.msra.mxu0 0.0
    %1288 = vmatprep.subr.mxu0 0.0
    %1289 = vmatpush1.msra.mxu0 0.0
    %1290 = vmatprep.subr.mxu0 0.0
    %1291 = vmatpush1.msra.mxu0 0.0
    %1292 = vmatprep.subr.mxu0 0.0
    %1293 = vmatpush1.msra.mxu0 0.0
    %1294 = vmatprep.subr.mxu0 0.0
    %1295 = vmatpush1.msra.mxu0 0.0
    %1296 = vmatprep.subr.mxu0 0.0
    %1297 = vmatpush1.msra.mxu0 0.0
    %1298 = vmatprep.subr.mxu0 0.0
    %1299 = vmatpush1.msra.mxu0 0.0
    %1300 = vmatprep.subr.mxu0 0.0
    %1301 = vmatpush1.msra.mxu0 0.0
    %1302 = vmatprep.subr.mxu0 0.0
    %1303 = vmatpush1.msra.mxu0 0.0
    %1304 = vmatprep.subr.mxu0 0.0
    %1305 = vmatpush1.msra.mxu0 0.0
    %1306 = vmatprep.subr.mxu0 0.0
    %1307 = vmatpush1.msra.mxu0 0.0
    %1308 = vmatprep.subr.mxu0 0.0
    %1309 = vmatpush1.msra.mxu0 0.0
    %1310 = vmatprep.subr.mxu0 0.0
    %1311 = vmatpush1.msra.mxu0 0.0
    %1312 = vmatprep.subr.mxu0 0.0
    %1313 = vmatpush1.msra.mxu0 0.0
    %1314 = vmatprep.subr.mxu0 0.0
    %1315 = vmatpush1.msra.mxu0 0.0
    %1316 = vmatprep.subr.mxu0 0.0
    %1317 = vmatpush1.msra.mxu0 0.0
    %1318 = vmatprep.subr.mxu0 0.0
    %1319 = vmatpush1.msra.mxu0 0.0
    %1320 = vmatprep.subr.mxu0 0.0
    %1321 = vmatpush1.msra.mxu0 0.0
    %1322 = vmatprep.subr.mxu0 0.0
    %1323 = vmatpush1.msra.mxu0 0.0
    %1324 = vmatprep.subr.mxu0 0.0
    %1325 = vmatpush1.msra.mxu0 0.0
    %1326 = vmatprep.subr.mxu0 0.0
    %1327 = vmatpush1.msra.mxu0 0.0
    %1328 = vmatprep.subr.mxu0 0.0
    %1329 = vmatpush1.msra.mxu0 0.0
    %1330 = vmatprep.mubr.f32.mxu0 0.0
    %v1331 = vand.u32 %v1110, 4294901760
    %v1332 = vsub.f32 %v1110, %v1331
    %1333 = vmatmul.mubr.f32.gmra.mrb[0].mxu0 %v1332
    %v1334 = vpop.f32.mrb[0].mxu0
    %v1335 = vadd.f32 %v1261, %v1334
    %v1336 = vpop.f32.mrb[0].mxu0
    %1337 = vdwg.mxu0
    %1338 = vmatprep.subr.mxu0 0.0
    %v1339 = vand.u32 %v1107, 4294901760
    %1340 = vmatpush1.msra.mxu0 %v1339
    %1341 = vmatprep.subr.mxu0 0.0
    %1342 = vmatpush1.msra.mxu0 0.0
    %1343 = vmatprep.subr.mxu0 0.0
    %1344 = vmatpush1.msra.mxu0 0.0
    %1345 = vmatprep.subr.mxu0 0.0
    %1346 = vmatpush1.msra.mxu0 0.0
    %1347 = vmatprep.subr.mxu0 0.0
    %1348 = vmatpush1.msra.mxu0 0.0
    %1349 = vmatprep.subr.mxu0 0.0
    %1350 = vmatpush1.msra.mxu0 0.0
    %1351 = vmatprep.subr.mxu0 0.0
    %1352 = vmatpush1.msra.mxu0 0.0
    %1353 = vmatprep.subr.mxu0 0.0
    %1354 = vmatpush1.msra.mxu0 0.0
    %1355 = vmatprep.subr.mxu0 0.0
    %1356 = vmatpush1.msra.mxu0 0.0
    %1357 = vmatprep.subr.mxu0 0.0
    %1358 = vmatpush1.msra.mxu0 0.0
    %1359 = vmatprep.subr.mxu0 0.0
    %1360 = vmatpush1.msra.mxu0 0.0
    %1361 = vmatprep.subr.mxu0 0.0
    %1362 = vmatpush1.msra.mxu0 0.0
    %1363 = vmatprep.subr.mxu0 0.0
    %1364 = vmatpush1.msra.mxu0 0.0
    %1365 = vmatprep.subr.mxu0 0.0
    %1366 = vmatpush1.msra.mxu0 0.0
    %1367 = vmatprep.subr.mxu0 0.0
    %1368 = vmatpush1.msra.mxu0 0.0
    %1369 = vmatprep.subr.mxu0 0.0
    %1370 = vmatpush1.msra.mxu0 0.0
    %1371 = vmatprep.subr.mxu0 0.0
    %1372 = vmatpush1.msra.mxu0 0.0
    %1373 = vmatprep.subr.mxu0 0.0
    %1374 = vmatpush1.msra.mxu0 0.0
    %1375 = vmatprep.subr.mxu0 0.0
    %1376 = vmatpush1.msra.mxu0 0.0
    %1377 = vmatprep.subr.mxu0 0.0
    %1378 = vmatpush1.msra.mxu0 0.0
    %1379 = vmatprep.subr.mxu0 0.0
    %1380 = vmatpush1.msra.mxu0 0.0
    %1381 = vmatprep.subr.mxu0 0.0
    %1382 = vmatpush1.msra.mxu0 0.0
    %1383 = vmatprep.subr.mxu0 0.0
    %1384 = vmatpush1.msra.mxu0 0.0
    %1385 = vmatprep.subr.mxu0 0.0
    %1386 = vmatpush1.msra.mxu0 0.0
    %1387 = vmatprep.subr.mxu0 0.0
    %1388 = vmatpush1.msra.mxu0 0.0
    %1389 = vmatprep.subr.mxu0 0.0
    %1390 = vmatpush1.msra.mxu0 0.0
    %1391 = vmatprep.subr.mxu0 0.0
    %1392 = vmatpush1.msra.mxu0 0.0
    %1393 = vmatprep.subr.mxu0 0.0
    %1394 = vmatpush1.msra.mxu0 0.0
    %1395 = vmatprep.subr.mxu0 0.0
    %1396 = vmatpush1.msra.mxu0 0.0
    %1397 = vmatprep.subr.mxu0 0.0
    %1398 = vmatpush1.msra.mxu0 0.0
    %1399 = vmatprep.subr.mxu0 0.0
    %1400 = vmatpush1.msra.mxu0 0.0
    %1401 = vmatprep.subr.mxu0 0.0
    %1402 = vmatpush1.msra.mxu0 0.0
    %1403 = vmatprep.mubr.f32.mxu0 0.0
    %v1404 = vand.u32 %v1110, 4294901760
    %v1405 = vsub.f32 %v1110, %v1404
    %v1406 = vand.u32 %v1405, 4294901760
    %1407 = vmatmul.mubr.f32.gmra.mrb[0].mxu0 %v1406
    %v1408 = vpop.f32.mrb[0].mxu0
    %v1409 = vadd.f32 %v1335, %v1408
    %v1410 = vpop.f32.mrb[0].mxu0
    %1411 = vdwg.mxu0
    %1412 = vmatprep.subr.mxu0 0.0
    %v1413 = vand.u32 %v1107, 4294901760
    %v1414 = vsub.f32 %v1107, %v1413
    %v1415 = vand.u32 %v1414, 4294901760
    %1416 = vmatpush1.msra.mxu0 %v1415
    %1417 = vmatprep.subr.mxu0 0.0
    %1418 = vmatpush1.msra.mxu0 0.0
    %1419 = vmatprep.subr.mxu0 0.0
    %1420 = vmatpush1.msra.mxu0 0.0
    %1421 = vmatprep.subr.mxu0 0.0
    %1422 = vmatpush1.msra.mxu0 0.0
    %1423 = vmatprep.subr.mxu0 0.0
    %1424 = vmatpush1.msra.mxu0 0.0
    %1425 = vmatprep.subr.mxu0 0.0
    %1426 = vmatpush1.msra.mxu0 0.0
    %1427 = vmatprep.subr.mxu0 0.0
    %1428 = vmatpush1.msra.mxu0 0.0
    %1429 = vmatprep.subr.mxu0 0.0
    %1430 = vmatpush1.msra.mxu0 0.0
    %1431 = vmatprep.subr.mxu0 0.0
    %1432 = vmatpush1.msra.mxu0 0.0
    %1433 = vmatprep.subr.mxu0 0.0
    %1434 = vmatpush1.msra.mxu0 0.0
    %1435 = vmatprep.subr.mxu0 0.0
    %1436 = vmatpush1.msra.mxu0 0.0
    %1437 = vmatprep.subr.mxu0 0.0
    %1438 = vmatpush1.msra.mxu0 0.0
    %1439 = vmatprep.subr.mxu0 0.0
    %1440 = vmatpush1.msra.mxu0 0.0
    %1441 = vmatprep.subr.mxu0 0.0
    %1442 = vmatpush1.msra.mxu0 0.0
    %1443 = vmatprep.subr.mxu0 0.0
    %1444 = vmatpush1.msra.mxu0 0.0
    %1445 = vmatprep.subr.mxu0 0.0
    %1446 = vmatpush1.msra.mxu0 0.0
    %1447 = vmatprep.subr.mxu0 0.0
    %1448 = vmatpush1.msra.mxu0 0.0
    %1449 = vmatprep.subr.mxu0 0.0
    %1450 = vmatpush1.msra.mxu0 0.0
    %1451 = vmatprep.subr.mxu0 0.0
    %1452 = vmatpush1.msra.mxu0 0.0
    %1453 = vmatprep.subr.mxu0 0.0
    %1454 = vmatpush1.msra.mxu0 0.0
    %1455 = vmatprep.subr.mxu0 0.0
    %1456 = vmatpush1.msra.mxu0 0.0
    %1457 = vmatprep.subr.mxu0 0.0
    %1458 = vmatpush1.msra.mxu0 0.0
    %1459 = vmatprep.subr.mxu0 0.0
    %1460 = vmatpush1.msra.mxu0 0.0
    %1461 = vmatprep.subr.mxu0 0.0
    %1462 = vmatpush1.msra.mxu0 0.0
    %1463 = vmatprep.subr.mxu0 0.0
    %1464 = vmatpush1.msra.mxu0 0.0
    %1465 = vmatprep.subr.mxu0 0.0
    %1466 = vmatpush1.msra.mxu0 0.0
    %1467 = vmatprep.subr.mxu0 0.0
    %1468 = vmatpush1.msra.mxu0 0.0
    %1469 = vmatprep.subr.mxu0 0.0
    %1470 = vmatpush1.msra.mxu0 0.0
    %1471 = vmatprep.subr.mxu0 0.0
    %1472 = vmatpush1.msra.mxu0 0.0
    %1473 = vmatprep.subr.mxu0 0.0
    %1474 = vmatpush1.msra.mxu0 0.0
    %1475 = vmatprep.subr.mxu0 0.0
    %1476 = vmatpush1.msra.mxu0 0.0
    %1477 = vmatprep.subr.mxu0 0.0
    %1478 = vmatpush1.msra.mxu0 0.0
    %1479 = vmatprep.mubr.f32.mxu0 0.0
    %v1480 = vand.u32 %v1110, 4294901760
    %1481 = vmatmul.mubr.f32.gmra.mrb[0].mxu0 %v1480
    %v1482 = vpop.f32.mrb[0].mxu0
    %v1483 = vadd.f32 %v1409, %v1482
    %v1484 = vpop.f32.mrb[0].mxu0
    %1485 = vdwg.mxu0
    %1486 = vmatprep.subr.mxu0 0.0
    %v1487 = vand.u32 %v1107, 4294901760
    %1488 = vmatpush1.msra.mxu0 %v1487
    %1489 = vmatprep.subr.mxu0 0.0
    %1490 = vmatpush1.msra.mxu0 0.0
    %1491 = vmatprep.subr.mxu0 0.0
    %1492 = vmatpush1.msra.mxu0 0.0
    %1493 = vmatprep.subr.mxu0 0.0
    %1494 = vmatpush1.msra.mxu0 0.0
    %1495 = vmatprep.subr.mxu0 0.0
    %1496 = vmatpush1.msra.mxu0 0.0
    %1497 = vmatprep.subr.mxu0 0.0
    %1498 = vmatpush1.msra.mxu0 0.0
    %1499 = vmatprep.subr.mxu0 0.0
    %1500 = vmatpush1.msra.mxu0 0.0
    %1501 = vmatprep.subr.mxu0 0.0
    %1502 = vmatpush1.msra.mxu0 0.0
    %1503 = vmatprep.subr.mxu0 0.0
    %1504 = vmatpush1.msra.mxu0 0.0
    %1505 = vmatprep.subr.mxu0 0.0
    %1506 = vmatpush1.msra.mxu0 0.0
    %1507 = vmatprep.subr.mxu0 0.0
    %1508 = vmatpush1.msra.mxu0 0.0
    %1509 = vmatprep.subr.mxu0 0.0
    %1510 = vmatpush1.msra.mxu0 0.0
    %1511 = vmatprep.subr.mxu0 0.0
    %1512 = vmatpush1.msra.mxu0 0.0
    %1513 = vmatprep.subr.mxu0 0.0
    %1514 = vmatpush1.msra.mxu0 0.0
    %1515 = vmatprep.subr.mxu0 0.0
    %1516 = vmatpush1.msra.mxu0 0.0
    %1517 = vmatprep.subr.mxu0 0.0
    %1518 = vmatpush1.msra.mxu0 0.0
    %1519 = vmatprep.subr.mxu0 0.0
    %1520 = vmatpush1.msra.mxu0 0.0
    %1521 = vmatprep.subr.mxu0 0.0
    %1522 = vmatpush1.msra.mxu0 0.0
    %1523 = vmatprep.subr.mxu0 0.0
    %1524 = vmatpush1.msra.mxu0 0.0
    %1525 = vmatprep.subr.mxu0 0.0
    %1526 = vmatpush1.msra.mxu0 0.0
    %1527 = vmatprep.subr.mxu0 0.0
    %1528 = vmatpush1.msra.mxu0 0.0
    %1529 = vmatprep.subr.mxu0 0.0
    %1530 = vmatpush1.msra.mxu0 0.0
    %1531 = vmatprep.subr.mxu0 0.0
    %1532 = vmatpush1.msra.mxu0 0.0
    %1533 = vmatprep.subr.mxu0 0.0
    %1534 = vmatpush1.msra.mxu0 0.0
    %1535 = vmatprep.subr.mxu0 0.0
    %1536 = vmatpush1.msra.mxu0 0.0
    %1537 = vmatprep.subr.mxu0 0.0
    %1538 = vmatpush1.msra.mxu0 0.0
    %1539 = vmatprep.subr.mxu0 0.0
    %1540 = vmatpush1.msra.mxu0 0.0
    %1541 = vmatprep.subr.mxu0 0.0
    %1542 = vmatpush1.msra.mxu0 0.0
    %1543 = vmatprep.subr.mxu0 0.0
    %1544 = vmatpush1.msra.mxu0 0.0
    %1545 = vmatprep.subr.mxu0 0.0
    %1546 = vmatpush1.msra.mxu0 0.0
    %1547 = vmatprep.subr.mxu0 0.0
    %1548 = vmatpush1.msra.mxu0 0.0
    %1549 = vmatprep.subr.mxu0 0.0
    %1550 = vmatpush1.msra.mxu0 0.0
    %1551 = vmatprep.mubr.f32.mxu0 0.0
    %v1552 = vand.u32 %v1110, 4294901760
    %1553 = vmatmul.mubr.f32.gmra.mrb[0].mxu0 %v1552
    %v1554 = vpop.f32.mrb[0].mxu0
    %v1555 = vadd.f32 %v1483, %v1554
    %v1556 = vpop.f32.mrb[0].mxu0
    %1557 = vdwg.mxu0
    %v1558 = vadd.f32 %v1104, %v1555
    %v1559 = vld [vmem:[#allocation8] sm:$0x1]
    %v1561 = vlaneseq
    %v1562 = vshrl.u32 %v1561, 7
    %v1563 = vsub.s32 0, %v1562
    %v1564 = vrot.slane %v1559, %v1563
    %v1566 = vadd.f32 %v1558, %v1564
    %v1567 = vmax.f32 %v1566, 0.0
    %v1568 = vld [vmem:[#allocation10] sm:$0xff]
    %v1569 = vld [vmem:[#allocation10 + $0x8] sm:$0xff]
    %v1570 = vld [vmem:[#allocation10 + $0x10] sm:$0xff]
    %v1571 = vld [vmem:[#allocation10 + $0x18] sm:$0xff]
    %v1572 = vld [vmem:[#allocation10 + $0x20] sm:$0xff]
    %v1573 = vld [vmem:[#allocation10 + $0x28] sm:$0xff]
    %v1574 = vld [vmem:[#allocation10 + $0x30] sm:$0xff]
    %v1575 = vld [vmem:[#allocation10 + $0x38] sm:$0xff]
    %v1576 = vld [vmem:[#allocation10 + $0x40] sm:$0xff]
    %v1577 = vld [vmem:[#allocation10 + $0x48] sm:$0xff]
    %v1578 = vld [vmem:[#allocation10 + $0x50] sm:$0xff]
    %v1579 = vld [vmem:[#allocation10 + $0x58] sm:$0xff]
    %v1580 = vld [vmem:[#allocation10 + $0x60] sm:$0xff]
    %v1581 = vld [vmem:[#allocation10 + $0x68] sm:$0xff]
    %v1582 = vld [vmem:[#allocation10 + $0x70] sm:$0xff]
    %v1583 = vld [vmem:[#allocation10 + $0x78] sm:$0xff]
    %v1584 = vld [vmem:[#allocation11] sm:$0x1]
    %v1586 = vlaneseq
    %v1587 = vshrl.u32 %v1586, 7
    %v1588 = vsub.s32 0, %v1587
    %v1589 = vrot.slane %v1584, %v1588
    %1591 = vmatprep.subr.mxu0 0.0
    %v1592 = vand.u32 %v1568, 4294901760
    %1593 = vmatpush1.msra.mxu0 %v1592
    %1594 = vmatprep.subr.mxu0 0.0
    %v1595 = vand.u32 %v1569, 4294901760
    %1596 = vmatpush1.msra.mxu0 %v1595
    %1597 = vmatprep.subr.mxu0 0.0
    %v1598 = vand.u32 %v1570, 4294901760
    %1599 = vmatpush1.msra.mxu0 %v1598
    %1600 = vmatprep.subr.mxu0 0.0
    %v1601 = vand.u32 %v1571, 4294901760
    %1602 = vmatpush1.msra.mxu0 %v1601
    %1603 = vmatprep.subr.mxu0 0.0
    %v1604 = vand.u32 %v1572, 4294901760
    %1605 = vmatpush1.msra.mxu0 %v1604
    %1606 = vmatprep.subr.mxu0 0.0
    %v1607 = vand.u32 %v1573, 4294901760
    %1608 = vmatpush1.msra.mxu0 %v1607
    %1609 = vmatprep.subr.mxu0 0.0
    %v1610 = vand.u32 %v1574, 4294901760
    %1611 = vmatpush1.msra.mxu0 %v1610
    %1612 = vmatprep.subr.mxu0 0.0
    %v1613 = vand.u32 %v1575, 4294901760
    %1614 = vmatpush1.msra.mxu0 %v1613
    %1615 = vmatprep.subr.mxu0 0.0
    %v1616 = vand.u32 %v1576, 4294901760
    %1617 = vmatpush1.msra.mxu0 %v1616
    %1618 = vmatprep.subr.mxu0 0.0
    %v1619 = vand.u32 %v1577, 4294901760
    %1620 = vmatpush1.msra.mxu0 %v1619
    %1621 = vmatprep.subr.mxu0 0.0
    %v1622 = vand.u32 %v1578, 4294901760
    %1623 = vmatpush1.msra.mxu0 %v1622
    %1624 = vmatprep.subr.mxu0 0.0
    %v1625 = vand.u32 %v1579, 4294901760
    %1626 = vmatpush1.msra.mxu0 %v1625
    %1627 = vmatprep.subr.mxu0 0.0
    %v1628 = vand.u32 %v1580, 4294901760
    %1629 = vmatpush1.msra.mxu0 %v1628
    %1630 = vmatprep.subr.mxu0 0.0
    %v1631 = vand.u32 %v1581, 4294901760
    %1632 = vmatpush1.msra.mxu0 %v1631
    %1633 = vmatprep.subr.mxu0 0.0
    %v1634 = vand.u32 %v1582, 4294901760
    %1635 = vmatpush1.msra.mxu0 %v1634
    %1636 = vmatprep.subr.mxu0 0.0
    %v1637 = vand.u32 %v1583, 4294901760
    %1638 = vmatpush1.msra.mxu0 %v1637
    %1639 = vmatprep.subr.mxu0 0.0
    %1640 = vmatpush1.msra.mxu0 0.0
    %1641 = vmatprep.subr.mxu0 0.0
    %1642 = vmatpush1.msra.mxu0 0.0
    %1643 = vmatprep.subr.mxu0 0.0
    %1644 = vmatpush1.msra.mxu0 0.0
    %1645 = vmatprep.subr.mxu0 0.0
    %1646 = vmatpush1.msra.mxu0 0.0
    %1647 = vmatprep.subr.mxu0 0.0
    %1648 = vmatpush1.msra.mxu0 0.0
    %1649 = vmatprep.subr.mxu0 0.0
    %1650 = vmatpush1.msra.mxu0 0.0
    %1651 = vmatprep.subr.mxu0 0.0
    %1652 = vmatpush1.msra.mxu0 0.0
    %1653 = vmatprep.subr.mxu0 0.0
    %1654 = vmatpush1.msra.mxu0 0.0
    %1655 = vmatprep.subr.mxu0 0.0
    %1656 = vmatpush1.msra.mxu0 0.0
    %1657 = vmatprep.subr.mxu0 0.0
    %1658 = vmatpush1.msra.mxu0 0.0
    %1659 = vmatprep.subr.mxu0 0.0
    %1660 = vmatpush1.msra.mxu0 0.0
    %1661 = vmatprep.subr.mxu0 0.0
    %1662 = vmatpush1.msra.mxu0 0.0
    %1663 = vmatprep.subr.mxu0 0.0
    %1664 = vmatpush1.msra.mxu0 0.0
    %1665 = vmatprep.subr.mxu0 0.0
    %1666 = vmatpush1.msra.mxu0 0.0
    %1667 = vmatprep.subr.mxu0 0.0
    %1668 = vmatpush1.msra.mxu0 0.0
    %1669 = vmatprep.subr.mxu0 0.0
    %1670 = vmatpush1.msra.mxu0 0.0
    %1671 = vmatprep.mubr.f32.mxu0 0.0
    %v1672 = vand.u32 %v1567, 4294901760
    %v1673 = vsub.f32 %v1567, %v1672
    %v1674 = vand.u32 %v1673, 4294901760
    %v1675 = vsub.f32 %v1673, %v1674
    %v1676 = vand.u32 %v1675, 4294901760
    %1677 = vmatmul.mubr.f32.gmra.mrb[0].mxu0 %v1676
    %v1678 = vpop.f32.mrb[0].mxu0
    %v1679 = vadd.f32 %v1589, %v1678
    %v1680 = vpop.f32.mrb[0].mxu0
    %1681 = vdwg.mxu0
    %1682 = vmatprep.subr.mxu0 0.0
    %v1683 = vand.u32 %v1568, 4294901760
    %v1684 = vsub.f32 %v1568, %v1683
    %v1685 = vand.u32 %v1684, 4294901760
    %v1686 = vsub.f32 %v1684, %v1685
    %v1687 = vand.u32 %v1686, 4294901760
    %1688 = vmatpush1.msra.mxu0 %v1687
    %1689 = vmatprep.subr.mxu0 0.0
    %v1690 = vand.u32 %v1569, 4294901760
    %v1691 = vsub.f32 %v1569, %v1690
    %v1692 = vand.u32 %v1691, 4294901760
    %v1693 = vsub.f32 %v1691, %v1692
    %v1694 = vand.u32 %v1693, 4294901760
    %1695 = vmatpush1.msra.mxu0 %v1694
    %1696 = vmatprep.subr.mxu0 0.0
    %v1697 = vand.u32 %v1570, 4294901760
    %v1698 = vsub.f32 %v1570, %v1697
    %v1699 = vand.u32 %v1698, 4294901760
    %v1700 = vsub.f32 %v1698, %v1699
    %v1701 = vand.u32 %v1700, 4294901760
    %1702 = vmatpush1.msra.mxu0 %v1701
    %1703 = vmatprep.subr.mxu0 0.0
    %v1704 = vand.u32 %v1571, 4294901760
    %v1705 = vsub.f32 %v1571, %v1704
    %v1706 = vand.u32 %v1705, 4294901760
    %v1707 = vsub.f32 %v1705, %v1706
    %v1708 = vand.u32 %v1707, 4294901760
    %1709 = vmatpush1.msra.mxu0 %v1708
    %1710 = vmatprep.subr.mxu0 0.0
    %v1711 = vand.u32 %v1572, 4294901760
    %v1712 = vsub.f32 %v1572, %v1711
    %v1713 = vand.u32 %v1712, 4294901760
    %v1714 = vsub.f32 %v1712, %v1713
    %v1715 = vand.u32 %v1714, 4294901760
    %1716 = vmatpush1.msra.mxu0 %v1715
    %1717 = vmatprep.subr.mxu0 0.0
    %v1718 = vand.u32 %v1573, 4294901760
    %v1719 = vsub.f32 %v1573, %v1718
    %v1720 = vand.u32 %v1719, 4294901760
    %v1721 = vsub.f32 %v1719, %v1720
    %v1722 = vand.u32 %v1721, 4294901760
    %1723 = vmatpush1.msra.mxu0 %v1722
    %1724 = vmatprep.subr.mxu0 0.0
    %v1725 = vand.u32 %v1574, 4294901760
    %v1726 = vsub.f32 %v1574, %v1725
    %v1727 = vand.u32 %v1726, 4294901760
    %v1728 = vsub.f32 %v1726, %v1727
    %v1729 = vand.u32 %v1728, 4294901760
    %1730 = vmatpush1.msra.mxu0 %v1729
    %1731 = vmatprep.subr.mxu0 0.0
    %v1732 = vand.u32 %v1575, 4294901760
    %v1733 = vsub.f32 %v1575, %v1732
    %v1734 = vand.u32 %v1733, 4294901760
    %v1735 = vsub.f32 %v1733, %v1734
    %v1736 = vand.u32 %v1735, 4294901760
    %1737 = vmatpush1.msra.mxu0 %v1736
    %1738 = vmatprep.subr.mxu0 0.0
    %v1739 = vand.u32 %v1576, 4294901760
    %v1740 = vsub.f32 %v1576, %v1739
    %v1741 = vand.u32 %v1740, 4294901760
    %v1742 = vsub.f32 %v1740, %v1741
    %v1743 = vand.u32 %v1742, 4294901760
    %1744 = vmatpush1.msra.mxu0 %v1743
    %1745 = vmatprep.subr.mxu0 0.0
    %v1746 = vand.u32 %v1577, 4294901760
    %v1747 = vsub.f32 %v1577, %v1746
    %v1748 = vand.u32 %v1747, 4294901760
    %v1749 = vsub.f32 %v1747, %v1748
    %v1750 = vand.u32 %v1749, 4294901760
    %1751 = vmatpush1.msra.mxu0 %v1750
    %1752 = vmatprep.subr.mxu0 0.0
    %v1753 = vand.u32 %v1578, 4294901760
    %v1754 = vsub.f32 %v1578, %v1753
    %v1755 = vand.u32 %v1754, 4294901760
    %v1756 = vsub.f32 %v1754, %v1755
    %v1757 = vand.u32 %v1756, 4294901760
    %1758 = vmatpush1.msra.mxu0 %v1757
    %1759 = vmatprep.subr.mxu0 0.0
    %v1760 = vand.u32 %v1579, 4294901760
    %v1761 = vsub.f32 %v1579, %v1760
    %v1762 = vand.u32 %v1761, 4294901760
    %v1763 = vsub.f32 %v1761, %v1762
    %v1764 = vand.u32 %v1763, 4294901760
    %1765 = vmatpush1.msra.mxu0 %v1764
    %1766 = vmatprep.subr.mxu0 0.0
    %v1767 = vand.u32 %v1580, 4294901760
    %v1768 = vsub.f32 %v1580, %v1767
    %v1769 = vand.u32 %v1768, 4294901760
    %v1770 = vsub.f32 %v1768, %v1769
    %v1771 = vand.u32 %v1770, 4294901760
    %1772 = vmatpush1.msra.mxu0 %v1771
    %1773 = vmatprep.subr.mxu0 0.0
    %v1774 = vand.u32 %v1581, 4294901760
    %v1775 = vsub.f32 %v1581, %v1774
    %v1776 = vand.u32 %v1775, 4294901760
    %v1777 = vsub.f32 %v1775, %v1776
    %v1778 = vand.u32 %v1777, 4294901760
    %1779 = vmatpush1.msra.mxu0 %v1778
    %1780 = vmatprep.subr.mxu0 0.0
    %v1781 = vand.u32 %v1582, 4294901760
    %v1782 = vsub.f32 %v1582, %v1781
    %v1783 = vand.u32 %v1782, 4294901760
    %v1784 = vsub.f32 %v1782, %v1783
    %v1785 = vand.u32 %v1784, 4294901760
    %1786 = vmatpush1.msra.mxu0 %v1785
    %1787 = vmatprep.subr.mxu0 0.0
    %v1788 = vand.u32 %v1583, 4294901760
    %v1789 = vsub.f32 %v1583, %v1788
    %v1790 = vand.u32 %v1789, 4294901760
    %v1791 = vsub.f32 %v1789, %v1790
    %v1792 = vand.u32 %v1791, 4294901760
    %1793 = vmatpush1.msra.mxu0 %v1792
    %1794 = vmatprep.subr.mxu0 0.0
    %1795 = vmatpush1.msra.mxu0 0.0
    %1796 = vmatprep.subr.mxu0 0.0
    %1797 = vmatpush1.msra.mxu0 0.0
    %1798 = vmatprep.subr.mxu0 0.0
    %1799 = vmatpush1.msra.mxu0 0.0
    %1800 = vmatprep.subr.mxu0 0.0
    %1801 = vmatpush1.msra.mxu0 0.0
    %1802 = vmatprep.subr.mxu0 0.0
    %1803 = vmatpush1.msra.mxu0 0.0
    %1804 = vmatprep.subr.mxu0 0.0
    %1805 = vmatpush1.msra.mxu0 0.0
    %1806 = vmatprep.subr.mxu0 0.0
    %1807 = vmatpush1.msra.mxu0 0.0
    %1808 = vmatprep.subr.mxu0 0.0
    %1809 = vmatpush1.msra.mxu0 0.0
    %1810 = vmatprep.subr.mxu0 0.0
    %1811 = vmatpush1.msra.mxu0 0.0
    %1812 = vmatprep.subr.mxu0 0.0
    %1813 = vmatpush1.msra.mxu0 0.0
    %1814 = vmatprep.subr.mxu0 0.0
    %1815 = vmatpush1.msra.mxu0 0.0
    %1816 = vmatprep.subr.mxu0 0.0
    %1817 = vmatpush1.msra.mxu0 0.0
    %1818 = vmatprep.subr.mxu0 0.0
    %1819 = vmatpush1.msra.mxu0 0.0
    %1820 = vmatprep.subr.mxu0 0.0
    %1821 = vmatpush1.msra.mxu0 0.0
    %1822 = vmatprep.subr.mxu0 0.0
    %1823 = vmatpush1.msra.mxu0 0.0
    %1824 = vmatprep.subr.mxu0 0.0
    %1825 = vmatpush1.msra.mxu0 0.0
    %1826 = vmatprep.mubr.f32.mxu0 0.0
    %v1827 = vand.u32 %v1567, 4294901760
    %1828 = vmatmul.mubr.f32.gmra.mrb[0].mxu0 %v1827
    %v1829 = vpop.f32.mrb[0].mxu0
    %v1830 = vadd.f32 %v1679, %v1829
    %v1831 = vpop.f32.mrb[0].mxu0
    %1832 = vdwg.mxu0
    %1833 = vmatprep.subr.mxu0 0.0
    %v1834 = vand.u32 %v1568, 4294901760
    %v1835 = vsub.f32 %v1568, %v1834
    %1836 = vmatpush1.msra.mxu0 %v1835
    %1837 = vmatprep.subr.mxu0 0.0
    %v1838 = vand.u32 %v1569, 4294901760
    %v1839 = vsub.f32 %v1569, %v1838
    %1840 = vmatpush1.msra.mxu0 %v1839
    %1841 = vmatprep.subr.mxu0 0.0
    %v1842 = vand.u32 %v1570, 4294901760
    %v1843 = vsub.f32 %v1570, %v1842
    %1844 = vmatpush1.msra.mxu0 %v1843
    %1845 = vmatprep.subr.mxu0 0.0
    %v1846 = vand.u32 %v1571, 4294901760
    %v1847 = vsub.f32 %v1571, %v1846
    %1848 = vmatpush1.msra.mxu0 %v1847
    %1849 = vmatprep.subr.mxu0 0.0
    %v1850 = vand.u32 %v1572, 4294901760
    %v1851 = vsub.f32 %v1572, %v1850
    %1852 = vmatpush1.msra.mxu0 %v1851
    %1853 = vmatprep.subr.mxu0 0.0
    %v1854 = vand.u32 %v1573, 4294901760
    %v1855 = vsub.f32 %v1573, %v1854
    %1856 = vmatpush1.msra.mxu0 %v1855
    %1857 = vmatprep.subr.mxu0 0.0
    %v1858 = vand.u32 %v1574, 4294901760
    %v1859 = vsub.f32 %v1574, %v1858
    %1860 = vmatpush1.msra.mxu0 %v1859
    %1861 = vmatprep.subr.mxu0 0.0
    %v1862 = vand.u32 %v1575, 4294901760
    %v1863 = vsub.f32 %v1575, %v1862
    %1864 = vmatpush1.msra.mxu0 %v1863
    %1865 = vmatprep.subr.mxu0 0.0
    %v1866 = vand.u32 %v1576, 4294901760
    %v1867 = vsub.f32 %v1576, %v1866
    %1868 = vmatpush1.msra.mxu0 %v1867
    %1869 = vmatprep.subr.mxu0 0.0
    %v1870 = vand.u32 %v1577, 4294901760
    %v1871 = vsub.f32 %v1577, %v1870
    %1872 = vmatpush1.msra.mxu0 %v1871
    %1873 = vmatprep.subr.mxu0 0.0
    %v1874 = vand.u32 %v1578, 4294901760
    %v1875 = vsub.f32 %v1578, %v1874
    %1876 = vmatpush1.msra.mxu0 %v1875
    %1877 = vmatprep.subr.mxu0 0.0
    %v1878 = vand.u32 %v1579, 4294901760
    %v1879 = vsub.f32 %v1579, %v1878
    %1880 = vmatpush1.msra.mxu0 %v1879
    %1881 = vmatprep.subr.mxu0 0.0
    %v1882 = vand.u32 %v1580, 4294901760
    %v1883 = vsub.f32 %v1580, %v1882
    %1884 = vmatpush1.msra.mxu0 %v1883
    %1885 = vmatprep.subr.mxu0 0.0
    %v1886 = vand.u32 %v1581, 4294901760
    %v1887 = vsub.f32 %v1581, %v1886
    %1888 = vmatpush1.msra.mxu0 %v1887
    %1889 = vmatprep.subr.mxu0 0.0
    %v1890 = vand.u32 %v1582, 4294901760
    %v1891 = vsub.f32 %v1582, %v1890
    %1892 = vmatpush1.msra.mxu0 %v1891
    %1893 = vmatprep.subr.mxu0 0.0
    %v1894 = vand.u32 %v1583, 4294901760
    %v1895 = vsub.f32 %v1583, %v1894
    %1896 = vmatpush1.msra.mxu0 %v1895
    %1897 = vmatprep.subr.mxu0 0.0
    %1898 = vmatpush1.msra.mxu0 0.0
    %1899 = vmatprep.subr.mxu0 0.0
    %1900 = vmatpush1.msra.mxu0 0.0
    %1901 = vmatprep.subr.mxu0 0.0
    %1902 = vmatpush1.msra.mxu0 0.0
    %1903 = vmatprep.subr.mxu0 0.0
    %1904 = vmatpush1.msra.mxu0 0.0
    %1905 = vmatprep.subr.mxu0 0.0
    %1906 = vmatpush1.msra.mxu0 0.0
    %1907 = vmatprep.subr.mxu0 0.0
    %1908 = vmatpush1.msra.mxu0 0.0
    %1909 = vmatprep.subr.mxu0 0.0
    %1910 = vmatpush1.msra.mxu0 0.0
    %1911 = vmatprep.subr.mxu0 0.0
    %1912 = vmatpush1.msra.mxu0 0.0
    %1913 = vmatprep.subr.mxu0 0.0
    %1914 = vmatpush1.msra.mxu0 0.0
    %1915 = vmatprep.subr.mxu0 0.0
    %1916 = vmatpush1.msra.mxu0 0.0
    %1917 = vmatprep.subr.mxu0 0.0
    %1918 = vmatpush1.msra.mxu0 0.0
    %1919 = vmatprep.subr.mxu0 0.0
    %1920 = vmatpush1.msra.mxu0 0.0
    %1921 = vmatprep.subr.mxu0 0.0
    %1922 = vmatpush1.msra.mxu0 0.0
    %1923 = vmatprep.subr.mxu0 0.0
    %1924 = vmatpush1.msra.mxu0 0.0
    %1925 = vmatprep.subr.mxu0 0.0
    %1926 = vmatpush1.msra.mxu0 0.0
    %1927 = vmatprep.subr.mxu0 0.0
    %1928 = vmatpush1.msra.mxu0 0.0
    %1929 = vmatprep.mubr.f32.mxu0 0.0
    %v1930 = vand.u32 %v1567, 4294901760
    %v1931 = vsub.f32 %v1567, %v1930
    %1932 = vmatmul.mubr.f32.gmra.mrb[0].mxu0 %v1931
    %v1933 = vpop.f32.mrb[0].mxu0
    %v1934 = vadd.f32 %v1830, %v1933
    %v1935 = vpop.f32.mrb[0].mxu0
    %1936 = vdwg.mxu0
    %1937 = vmatprep.subr.mxu0 0.0
    %v1938 = vand.u32 %v1568, 4294901760
    %1939 = vmatpush1.msra.mxu0 %v1938
    %1940 = vmatprep.subr.mxu0 0.0
    %v1941 = vand.u32 %v1569, 4294901760
    %1942 = vmatpush1.msra.mxu0 %v1941
    %1943 = vmatprep.subr.mxu0 0.0
    %v1944 = vand.u32 %v1570, 4294901760
    %1945 = vmatpush1.msra.mxu0 %v1944
    %1946 = vmatprep.subr.mxu0 0.0
    %v1947 = vand.u32 %v1571, 4294901760
    %1948 = vmatpush1.msra.mxu0 %v1947
    %1949 = vmatprep.subr.mxu0 0.0
    %v1950 = vand.u32 %v1572, 4294901760
    %1951 = vmatpush1.msra.mxu0 %v1950
    %1952 = vmatprep.subr.mxu0 0.0
    %v1953 = vand.u32 %v1573, 4294901760
    %1954 = vmatpush1.msra.mxu0 %v1953
    %1955 = vmatprep.subr.mxu0 0.0
    %v1956 = vand.u32 %v1574, 4294901760
    %1957 = vmatpush1.msra.mxu0 %v1956
    %1958 = vmatprep.subr.mxu0 0.0
    %v1959 = vand.u32 %v1575, 4294901760
    %1960 = vmatpush1.msra.mxu0 %v1959
    %1961 = vmatprep.subr.mxu0 0.0
    %v1962 = vand.u32 %v1576, 4294901760
    %1963 = vmatpush1.msra.mxu0 %v1962
    %1964 = vmatprep.subr.mxu0 0.0
    %v1965 = vand.u32 %v1577, 4294901760
    %1966 = vmatpush1.msra.mxu0 %v1965
    %1967 = vmatprep.subr.mxu0 0.0
    %v1968 = vand.u32 %v1578, 4294901760
    %1969 = vmatpush1.msra.mxu0 %v1968
    %1970 = vmatprep.subr.mxu0 0.0
    %v1971 = vand.u32 %v1579, 4294901760
    %1972 = vmatpush1.msra.mxu0 %v1971
    %1973 = vmatprep.subr.mxu0 0.0
    %v1974 = vand.u32 %v1580, 4294901760
    %1975 = vmatpush1.msra.mxu0 %v1974
    %1976 = vmatprep.subr.mxu0 0.0
    %v1977 = vand.u32 %v1581, 4294901760
    %1978 = vmatpush1.msra.mxu0 %v1977
    %1979 = vmatprep.subr.mxu0 0.0
    %v1980 = vand.u32 %v1582, 4294901760
    %1981 = vmatpush1.msra.mxu0 %v1980
    %1982 = vmatprep.subr.mxu0 0.0
    %v1983 = vand.u32 %v1583, 4294901760
    %1984 = vmatpush1.msra.mxu0 %v1983
    %1985 = vmatprep.subr.mxu0 0.0
    %1986 = vmatpush1.msra.mxu0 0.0
    %1987 = vmatprep.subr.mxu0 0.0
    %1988 = vmatpush1.msra.mxu0 0.0
    %1989 = vmatprep.subr.mxu0 0.0
    %1990 = vmatpush1.msra.mxu0 0.0
    %1991 = vmatprep.subr.mxu0 0.0
    %1992 = vmatpush1.msra.mxu0 0.0
    %1993 = vmatprep.subr.mxu0 0.0
    %1994 = vmatpush1.msra.mxu0 0.0
    %1995 = vmatprep.subr.mxu0 0.0
    %1996 = vmatpush1.msra.mxu0 0.0
    %1997 = vmatprep.subr.mxu0 0.0
    %1998 = vmatpush1.msra.mxu0 0.0
    %1999 = vmatprep.subr.mxu0 0.0
    %2000 = vmatpush1.msra.mxu0 0.0
    %2001 = vmatprep.subr.mxu0 0.0
    %2002 = vmatpush1.msra.mxu0 0.0
    %2003 = vmatprep.subr.mxu0 0.0
    %2004 = vmatpush1.msra.mxu0 0.0
    %2005 = vmatprep.subr.mxu0 0.0
    %2006 = vmatpush1.msra.mxu0 0.0
    %2007 = vmatprep.subr.mxu0 0.0
    %2008 = vmatpush1.msra.mxu0 0.0
    %2009 = vmatprep.subr.mxu0 0.0
    %2010 = vmatpush1.msra.mxu0 0.0
    %2011 = vmatprep.subr.mxu0 0.0
    %2012 = vmatpush1.msra.mxu0 0.0
    %2013 = vmatprep.subr.mxu0 0.0
    %2014 = vmatpush1.msra.mxu0 0.0
    %2015 = vmatprep.subr.mxu0 0.0
    %2016 = vmatpush1.msra.mxu0 0.0
    %2017 = vmatprep.mubr.f32.mxu0 0.0
    %v2018 = vand.u32 %v1567, 4294901760
    %v2019 = vsub.f32 %v1567, %v2018
    %v2020 = vand.u32 %v2019, 4294901760
    %2021 = vmatmul.mubr.f32.gmra.mrb[0].mxu0 %v2020
    %v2022 = vpop.f32.mrb[0].mxu0
    %v2023 = vadd.f32 %v1934, %v2022
    %v2024 = vpop.f32.mrb[0].mxu0
    %2025 = vdwg.mxu0
    %2026 = vmatprep.subr.mxu0 0.0
    %v2027 = vand.u32 %v1568, 4294901760
    %v2028 = vsub.f32 %v1568, %v2027
    %v2029 = vand.u32 %v2028, 4294901760
    %2030 = vmatpush1.msra.mxu0 %v2029
    %2031 = vmatprep.subr.mxu0 0.0
    %v2032 = vand.u32 %v1569, 4294901760
    %v2033 = vsub.f32 %v1569, %v2032
    %v2034 = vand.u32 %v2033, 4294901760
    %2035 = vmatpush1.msra.mxu0 %v2034
    %2036 = vmatprep.subr.mxu0 0.0
    %v2037 = vand.u32 %v1570, 4294901760
    %v2038 = vsub.f32 %v1570, %v2037
    %v2039 = vand.u32 %v2038, 4294901760
    %2040 = vmatpush1.msra.mxu0 %v2039
    %2041 = vmatprep.subr.mxu0 0.0
    %v2042 = vand.u32 %v1571, 4294901760
    %v2043 = vsub.f32 %v1571, %v2042
    %v2044 = vand.u32 %v2043, 4294901760
    %2045 = vmatpush1.msra.mxu0 %v2044
    %2046 = vmatprep.subr.mxu0 0.0
    %v2047 = vand.u32 %v1572, 4294901760
    %v2048 = vsub.f32 %v1572, %v2047
    %v2049 = vand.u32 %v2048, 4294901760
    %2050 = vmatpush1.msra.mxu0 %v2049
    %2051 = vmatprep.subr.mxu0 0.0
    %v2052 = vand.u32 %v1573, 4294901760
    %v2053 = vsub.f32 %v1573, %v2052
    %v2054 = vand.u32 %v2053, 4294901760
    %2055 = vmatpush1.msra.mxu0 %v2054
    %2056 = vmatprep.subr.mxu0 0.0
    %v2057 = vand.u32 %v1574, 4294901760
    %v2058 = vsub.f32 %v1574, %v2057
    %v2059 = vand.u32 %v2058, 4294901760
    %2060 = vmatpush1.msra.mxu0 %v2059
    %2061 = vmatprep.subr.mxu0 0.0
    %v2062 = vand.u32 %v1575, 4294901760
    %v2063 = vsub.f32 %v1575, %v2062
    %v2064 = vand.u32 %v2063, 4294901760
    %2065 = vmatpush1.msra.mxu0 %v2064
    %2066 = vmatprep.subr.mxu0 0.0
    %v2067 = vand.u32 %v1576, 4294901760
    %v2068 = vsub.f32 %v1576, %v2067
    %v2069 = vand.u32 %v2068, 4294901760
    %2070 = vmatpush1.msra.mxu0 %v2069
    %2071 = vmatprep.subr.mxu0 0.0
    %v2072 = vand.u32 %v1577, 4294901760
    %v2073 = vsub.f32 %v1577, %v2072
    %v2074 = vand.u32 %v2073, 4294901760
    %2075 = vmatpush1.msra.mxu0 %v2074
    %2076 = vmatprep.subr.mxu0 0.0
    %v2077 = vand.u32 %v1578, 4294901760
    %v2078 = vsub.f32 %v1578, %v2077
    %v2079 = vand.u32 %v2078, 4294901760
    %2080 = vmatpush1.msra.mxu0 %v2079
    %2081 = vmatprep.subr.mxu0 0.0
    %v2082 = vand.u32 %v1579, 4294901760
    %v2083 = vsub.f32 %v1579, %v2082
    %v2084 = vand.u32 %v2083, 4294901760
    %2085 = vmatpush1.msra.mxu0 %v2084
    %2086 = vmatprep.subr.mxu0 0.0
    %v2087 = vand.u32 %v1580, 4294901760
    %v2088 = vsub.f32 %v1580, %v2087
    %v2089 = vand.u32 %v2088, 4294901760
    %2090 = vmatpush1.msra.mxu0 %v2089
    %2091 = vmatprep.subr.mxu0 0.0
    %v2092 = vand.u32 %v1581, 4294901760
    %v2093 = vsub.f32 %v1581, %v2092
    %v2094 = vand.u32 %v2093, 4294901760
    %2095 = vmatpush1.msra.mxu0 %v2094
    %2096 = vmatprep.subr.mxu0 0.0
    %v2097 = vand.u32 %v1582, 4294901760
    %v2098 = vsub.f32 %v1582, %v2097
    %v2099 = vand.u32 %v2098, 4294901760
    %2100 = vmatpush1.msra.mxu0 %v2099
    %2101 = vmatprep.subr.mxu0 0.0
    %v2102 = vand.u32 %v1583, 4294901760
    %v2103 = vsub.f32 %v1583, %v2102
    %v2104 = vand.u32 %v2103, 4294901760
    %2105 = vmatpush1.msra.mxu0 %v2104
    %2106 = vmatprep.subr.mxu0 0.0
    %2107 = vmatpush1.msra.mxu0 0.0
    %2108 = vmatprep.subr.mxu0 0.0
    %2109 = vmatpush1.msra.mxu0 0.0
    %2110 = vmatprep.subr.mxu0 0.0
    %2111 = vmatpush1.msra.mxu0 0.0
    %2112 = vmatprep.subr.mxu0 0.0
    %2113 = vmatpush1.msra.mxu0 0.0
    %2114 = vmatprep.subr.mxu0 0.0
    %2115 = vmatpush1.msra.mxu0 0.0
    %2116 = vmatprep.subr.mxu0 0.0
    %2117 = vmatpush1.msra.mxu0 0.0
    %2118 = vmatprep.subr.mxu0 0.0
    %2119 = vmatpush1.msra.mxu0 0.0
    %2120 = vmatprep.subr.mxu0 0.0
    %2121 = vmatpush1.msra.mxu0 0.0
    %2122 = vmatprep.subr.mxu0 0.0
    %2123 = vmatpush1.msra.mxu0 0.0
    %2124 = vmatprep.subr.mxu0 0.0
    %2125 = vmatpush1.msra.mxu0 0.0
    %2126 = vmatprep.subr.mxu0 0.0
    %2127 = vmatpush1.msra.mxu0 0.0
    %2128 = vmatprep.subr.mxu0 0.0
    %2129 = vmatpush1.msra.mxu0 0.0
    %2130 = vmatprep.subr.mxu0 0.0
    %2131 = vmatpush1.msra.mxu0 0.0
    %2132 = vmatprep.subr.mxu0 0.0
    %2133 = vmatpush1.msra.mxu0 0.0
    %2134 = vmatprep.subr.mxu0 0.0
    %2135 = vmatpush1.msra.mxu0 0.0
    %2136 = vmatprep.subr.mxu0 0.0
    %2137 = vmatpush1.msra.mxu0 0.0
    %2138 = vmatprep.mubr.f32.mxu0 0.0
    %v2139 = vand.u32 %v1567, 4294901760
    %2140 = vmatmul.mubr.f32.gmra.mrb[0].mxu0 %v2139
    %v2141 = vpop.f32.mrb[0].mxu0
    %v2142 = vadd.f32 %v2023, %v2141
    %v2143 = vpop.f32.mrb[0].mxu0
    %2144 = vdwg.mxu0
    %2145 = vmatprep.subr.mxu0 0.0
    %v2146 = vand.u32 %v1568, 4294901760
    %2147 = vmatpush1.msra.mxu0 %v2146
    %2148 = vmatprep.subr.mxu0 0.0
    %v2149 = vand.u32 %v1569, 4294901760
    %2150 = vmatpush1.msra.mxu0 %v2149
    %2151 = vmatprep.subr.mxu0 0.0
    %v2152 = vand.u32 %v1570, 4294901760
    %2153 = vmatpush1.msra.mxu0 %v2152
    %2154 = vmatprep.subr.mxu0 0.0
    %v2155 = vand.u32 %v1571, 4294901760
    %2156 = vmatpush1.msra.mxu0 %v2155
    %2157 = vmatprep.subr.mxu0 0.0
    %v2158 = vand.u32 %v1572, 4294901760
    %2159 = vmatpush1.msra.mxu0 %v2158
    %2160 = vmatprep.subr.mxu0 0.0
    %v2161 = vand.u32 %v1573, 4294901760
    %2162 = vmatpush1.msra.mxu0 %v2161
    %2163 = vmatprep.subr.mxu0 0.0
    %v2164 = vand.u32 %v1574, 4294901760
    %2165 = vmatpush1.msra.mxu0 %v2164
    %2166 = vmatprep.subr.mxu0 0.0
    %v2167 = vand.u32 %v1575, 4294901760
    %2168 = vmatpush1.msra.mxu0 %v2167
    %2169 = vmatprep.subr.mxu0 0.0
    %v2170 = vand.u32 %v1576, 4294901760
    %2171 = vmatpush1.msra.mxu0 %v2170
    %2172 = vmatprep.subr.mxu0 0.0
    %v2173 = vand.u32 %v1577, 4294901760
    %2174 = vmatpush1.msra.mxu0 %v2173
    %2175 = vmatprep.subr.mxu0 0.0
    %v2176 = vand.u32 %v1578, 4294901760
    %2177 = vmatpush1.msra.mxu0 %v2176
    %2178 = vmatprep.subr.mxu0 0.0
    %v2179 = vand.u32 %v1579, 4294901760
    %2180 = vmatpush1.msra.mxu0 %v2179
    %2181 = vmatprep.subr.mxu0 0.0
    %v2182 = vand.u32 %v1580, 4294901760
    %2183 = vmatpush1.msra.mxu0 %v2182
    %2184 = vmatprep.subr.mxu0 0.0
    %v2185 = vand.u32 %v1581, 4294901760
    %2186 = vmatpush1.msra.mxu0 %v2185
    %2187 = vmatprep.subr.mxu0 0.0
    %v2188 = vand.u32 %v1582, 4294901760
    %2189 = vmatpush1.msra.mxu0 %v2188
    %2190 = vmatprep.subr.mxu0 0.0
    %v2191 = vand.u32 %v1583, 4294901760
    %2192 = vmatpush1.msra.mxu0 %v2191
    %2193 = vmatprep.subr.mxu0 0.0
    %2194 = vmatpush1.msra.mxu0 0.0
    %2195 = vmatprep.subr.mxu0 0.0
    %2196 = vmatpush1.msra.mxu0 0.0
    %2197 = vmatprep.subr.mxu0 0.0
    %2198 = vmatpush1.msra.mxu0 0.0
    %2199 = vmatprep.subr.mxu0 0.0
    %2200 = vmatpush1.msra.mxu0 0.0
    %2201 = vmatprep.subr.mxu0 0.0
    %2202 = vmatpush1.msra.mxu0 0.0
    %2203 = vmatprep.subr.mxu0 0.0
    %2204 = vmatpush1.msra.mxu0 0.0
    %2205 = vmatprep.subr.mxu0 0.0
    %2206 = vmatpush1.msra.mxu0 0.0
    %2207 = vmatprep.subr.mxu0 0.0
    %2208 = vmatpush1.msra.mxu0 0.0
    %2209 = vmatprep.subr.mxu0 0.0
    %2210 = vmatpush1.msra.mxu0 0.0
    %2211 = vmatprep.subr.mxu0 0.0
    %2212 = vmatpush1.msra.mxu0 0.0
    %2213 = vmatprep.subr.mxu0 0.0
    %2214 = vmatpush1.msra.mxu0 0.0
    %2215 = vmatprep.subr.mxu0 0.0
    %2216 = vmatpush1.msra.mxu0 0.0
    %2217 = vmatprep.subr.mxu0 0.0
    %2218 = vmatpush1.msra.mxu0 0.0
    %2219 = vmatprep.subr.mxu0 0.0
    %2220 = vmatpush1.msra.mxu0 0.0
    %2221 = vmatprep.subr.mxu0 0.0
    %2222 = vmatpush1.msra.mxu0 0.0
    %2223 = vmatprep.subr.mxu0 0.0
    %2224 = vmatpush1.msra.mxu0 0.0
    %2225 = vmatprep.mubr.f32.mxu0 0.0
    %v2226 = vand.u32 %v1567, 4294901760
    %2227 = vmatmul.mubr.f32.gmra.mrb[0].mxu0 %v2226
    %v2228 = vpop.f32.mrb[0].mxu0
    %v2229 = vadd.f32 %v2142, %v2228
    %v2230 = vpop.f32.mrb[0].mxu0
    %2231 = vdwg.mxu0
    %2232 = vst.msk [vmem:[#allocation13] sm:$0xff] %vm130, %v2229
    %2234 = vrot.lane.b32.xlu0 %v2229, 96
    %v2235 = vpop.permute.xlu0 %2234
    %vm2237 = vcmask 31744
    %2238 = vst.msk [vmem:[%s10] sm:$0xff] %vm2237, %v2235
    // Predicated region
    $region62: #{icm_output_heads.1} parent=1 // pred_check
      _
    $region63: #{icm_output_heads.1} parent=1 // pred_check_branch
      %2240 = sbr.rel (0) target = $region65
    $region64: #{icm_output_heads.1} parent=1 // pred_region
      %s2242 = ssub.s32 128, 128
      %2243 = vsyncadd [#allocation4], %s2242
      %s2245 = sshll.u32 [#allocation13], 4
      %s2246 = int_to_ptr.vmem [resolvable:$true] %s2245
      %2248 = dma.vmem_to_hbm [thread:$0]  %s2246, 128, %s9, [#allocation4]
    $region65: #{icm_output_heads.1} parent=1 // pred_fallthru
      _
    // Predicated region
    $region66: #{icm_output_heads.1} parent=1 // pred_check
      _
    $region67: #{icm_output_heads.1} parent=1 // pred_check_branch
      %2250 = sbr.rel (0) target = $region69
    $region68: #{icm_output_heads.1} parent=1 // pred_region
      _
    $region69: #{icm_output_heads.1} parent=1 // pred_fallthru
      _
    // Predicated region
    $region70: #{icm_output_heads.1} parent=1 // pred_check
      _
    $region71: #{icm_output_heads.1} parent=1 // pred_check_branch
      %2252 = sbr.rel (0) target = $region73
    $region72: #{icm_output_heads.1} parent=1 // pred_region
      %2253 = dma.done [#allocation4], 128
    $region73: #{icm_output_heads.1} parent=1 // pred_fallthru
      _
    // Predicated region
    $region74: #{icm_output_heads.1} parent=1 // pred_check
      _
    $region75: #{icm_output_heads.1} parent=1 // pred_check_branch
      %2255 = sbr.rel (0) target = $region77
    $region76: #{icm_output_heads.1} parent=1 // pred_region
      _
    $region77: #{icm_output_heads.1} parent=1 // pred_fallthru
      _
    %2256 = vsyncpa [#allocation3], 1
    %2257 = vsyncpa [#allocation6], 1
    %2258 = vsyncpa [#allocation9], 1
    %2259 = vsyncpa [#allocation12], 1
    %2260 = vsyncpa [#allocation4], 1

</llo_original>
